<compile_context>
chip_gen: v7x
topology: tpu7x:2x2x1
jax: 0.10.0
libtpu: 0.0.40
codegen_flags: <defaults>
</compile_context>

<pallas_src>
import functools

import jax
import jax.numpy as jnp
from jax.experimental import pallas as pl
from jax.experimental.pallas import tpu as pltpu

LN_EPS = 1e-5


def _layernorm(x, gamma, beta):
    mu = jnp.mean(x, axis=-1, keepdims=True)
    var = jnp.mean((x - mu) ** 2, axis=-1, keepdims=True)
    return (x - mu) * jax.lax.rsqrt(var + LN_EPS) * gamma + beta


# ---------------------------------------------------------------- kernels ---
def _encoder_kernel(x_ref, pos_ref, mask_ref,
                    ln1_g, ln1_b, wqkv, bqkv, wo, bo,
                    ln2_g, ln2_b, w1, b1, w2, b2,
                    o_ref, acc_ref, attn_ref, *, num_heads, seq_len):
    """One grid step = one (batch-tile, layer) pair of the CLIP text transformer.

    acc_ref : (Bt*L, D) f32 VMEM scratch -- residual stream, carried across the
              layer grid axis, re-initialised (with +pos) at layer 0.
    attn_ref: (Bt, L, D) f32 VMEM scratch -- per-head attention outputs are
              written into lane slices here (no lane-axis concatenate).
    """
    layer = pl.program_id(1)
    n_layers = pl.num_programs(1)

    M, D = acc_ref.shape                      # M = Bt * L
    L = seq_len
    Bt = M // L
    H = num_heads
    hd = D // H
    scale = hd ** -0.5

    # layer 0: load this batch tile and add the positional embedding.
    @pl.when(layer == 0)
    def _():
        acc_ref[...] = x_ref[...] + pos_ref[...]

    x = acc_ref[...]                                            # (M, D) f32

    # ---- attention branch (pre-LN, causal mask, multi-head) ----
    h = _layernorm(x, ln1_g[0], ln1_b[0])
    qkv = jnp.dot(h.astype(jnp.bfloat16), wqkv[0],
                  preferred_element_type=jnp.float32) + bqkv[0]  # (M, 3D) f32
    qkv3 = qkv.reshape(Bt, L, 3 * D)
    causal = mask_ref[...]                     # (L, L) additive mask, resident

    for hi in range(H):                        # static unroll over heads
        # fold the 1/sqrt(hd) scale into q (M*hd mults, not Bt*H*L*L)
        qh = (qkv3[:, :, hi * hd:(hi + 1) * hd] * scale).astype(jnp.bfloat16)
        kh = qkv3[:, :, D + hi * hd:D + (hi + 1) * hd].astype(jnp.bfloat16)
        vh = qkv3[:, :, 2 * D + hi * hd:2 * D + (hi + 1) * hd].astype(jnp.bfloat16)
        s = jnp.einsum('bqd,bkd->bqk', qh, kh,
                       preferred_element_type=jnp.float32)
        s = s + causal[None]
        s = s - jnp.max(s, axis=-1, keepdims=True)
        e = jnp.exp(s)
        p = e * pl.reciprocal(jnp.sum(e, axis=-1, keepdims=True), approx=True)
        attn_ref[:, :, hi * hd:(hi + 1) * hd] = jnp.einsum(
            'bqk,bkd->bqd', p.astype(jnp.bfloat16), vh,
            preferred_element_type=jnp.float32)

    attn = attn_ref[...].reshape(M, D)
    x = x + jnp.dot(attn.astype(jnp.bfloat16), wo[0],
                    preferred_element_type=jnp.float32) + bo[0]

    # ---- MLP branch (QuickGELU as in CLIP) ----
    h2 = _layernorm(x, ln2_g[0], ln2_b[0])
    m = jnp.dot(h2.astype(jnp.bfloat16), w1[0],
                preferred_element_type=jnp.float32) + b1[0]
    m = m * jax.nn.sigmoid(1.702 * m)
    m = jnp.dot(m.astype(jnp.bfloat16), w2[0],
                preferred_element_type=jnp.float32) + b2[0]
    x = x + m

    acc_ref[...] = x

    @pl.when(layer == n_layers - 1)
    def _():
        o_ref[...] = x.astype(o_ref.dtype)


def _head_kernel(x_ref, g_ref, b_ref, proj_ref, o_ref):
    h = _layernorm(x_ref[...], g_ref[...], b_ref[...])
    o_ref[...] = jnp.dot(h.astype(jnp.bfloat16), proj_ref[...],
                         preferred_element_type=jnp.float32)


# --------------------------------------------------------------- wrappers ---
def text_head(x_eot, ln_g, ln_b, proj_bf16):
    B, _ = x_eot.shape
    O = proj_bf16.shape[1]
    return pl.pallas_call(
        _head_kernel,
        out_shape=jax.ShapeDtypeStruct((B, O), jnp.float32),
    )(x_eot, ln_g, ln_b, proj_bf16)


def text_encoder(prompts, tokenized_prompts, params, *, batch_tile=None):
    """Pallas implementation of TextEncoder.forward."""
    B, L, D = prompts.shape
    layers = params['layers']
    n_layers = len(layers)
    H = params['num_heads']
    bt = B if batch_tile is None else batch_tile
    assert B % bt == 0
    Mt = bt * L
    bf16 = jnp.bfloat16

    # Stack per-layer params along a leading layer axis; matmul weights as bf16
    # (half DMA bytes, full-rate MXU), LN params / biases stay f32.
    ln1_g = jnp.stack([p['ln1_g'] for p in layers])              # (n, 1, D)
    ln1_b = jnp.stack([p['ln1_b'] for p in layers])
    wqkv = jnp.stack([p['wqkv'] for p in layers]).astype(bf16)   # (n, D, 3D)
    bqkv = jnp.stack([p['bqkv'] for p in layers])
    wo = jnp.stack([p['wo'] for p in layers]).astype(bf16)
    bo = jnp.stack([p['bo'] for p in layers])
    ln2_g = jnp.stack([p['ln2_g'] for p in layers])
    ln2_b = jnp.stack([p['ln2_b'] for p in layers])
    w1 = jnp.stack([p['w1'] for p in layers]).astype(bf16)
    b1 = jnp.stack([p['b1'] for p in layers])
    w2 = jnp.stack([p['w2'] for p in layers]).astype(bf16)
    b2 = jnp.stack([p['b2'] for p in layers])

    x2d = prompts.reshape(B * L, D)                  # fold batch into matmul M
    pos2d = jnp.tile(params['pos'], (bt, 1))         # (bt*L, D)

    # causal additive mask, built once and kept resident in VMEM
    row = jnp.arange(L)[:, None]
    col = jnp.arange(L)[None, :]
    mask = jnp.where(col <= row, 0.0, -jnp.inf).astype(jnp.float32)   # (L, L)

    def wspec(arr):
        nd = arr.ndim
        return pl.BlockSpec((1,) + arr.shape[1:],
                            lambda b, l: (l,) + (0,) * (nd - 1))

    in_specs = [
        pl.BlockSpec((Mt, D), lambda b, l: (b, 0)),        # activations tile
        pl.BlockSpec((Mt, D), lambda b, l: (0, 0)),        # positional emb
        pl.BlockSpec((L, L), lambda b, l: (0, 0)),         # causal mask
        wspec(ln1_g), wspec(ln1_b), wspec(wqkv), wspec(bqkv), wspec(wo),
        wspec(bo), wspec(ln2_g), wspec(ln2_b), wspec(w1), wspec(b1),
        wspec(w2), wspec(b2),
    ]

    x_out = pl.pallas_call(
        functools.partial(_encoder_kernel, num_heads=H, seq_len=L),
        grid=(B // bt, n_layers),
        in_specs=in_specs,
        out_specs=pl.BlockSpec((Mt, D), lambda b, l: (b, 0)),
        out_shape=jax.ShapeDtypeStruct((B * L, D), jnp.float32),
        scratch_shapes=[pltpu.VMEM((Mt, D), jnp.float32),     # residual stream
                        pltpu.VMEM((bt, L, D), jnp.float32)], # head outputs
        compiler_params=pltpu.CompilerParams(
            dimension_semantics=("parallel", "arbitrary"),
            vmem_limit_bytes=48 * 1024 * 1024),
    )(x2d, pos2d, mask, ln1_g, ln1_b, wqkv, bqkv, wo, bo,
      ln2_g, ln2_b, w1, b1, w2, b2)

    x_out = x_out.reshape(B, L, D)
    # EOT-token gather (plain-JAX glue; ln_final is row-wise so applying it
    # after the gather is exact).
    eot = jnp.argmax(tokenized_prompts, axis=-1)
    x_eot = x_out[jnp.arange(B), eot]
    return text_head(x_eot, params['lnf_g'], params['lnf_b'],
                     params['proj'].astype(bf16))


# ----------------------------------------------------------- pure-JAX ref ---
def reference(prompts, tokenized, params):
    with jax.default_matmul_precision("highest"):
        num_heads = params['num_heads']
        x = prompts + params['pos']
        B, L, D = x.shape
        hd = D // num_heads
        row = jnp.arange(L)[:, None]
        col = jnp.arange(L)[None, :]
        causal = jnp.where(col <= row, 0.0, -jnp.inf)
        for p in params['layers']:
            h = _layernorm(x, p['ln1_g'], p['ln1_b'])
            qkv = h @ p['wqkv'] + p['bqkv']
            q, k, v = jnp.split(qkv, 3, axis=-1)
            q = q.reshape(B, L, num_heads, hd)
            k = k.reshape(B, L, num_heads, hd)
            v = v.reshape(B, L, num_heads, hd)
            s = jnp.einsum('bqhd,bkhd->bhqk', q, k) * (hd ** -0.5) + causal
            a = jax.nn.softmax(s, axis=-1)
            attn = jnp.einsum('bhqk,bkhd->bqhd', a, v).reshape(B, L, D)
            x = x + attn @ p['wo'] + p['bo']
            h2 = _layernorm(x, p['ln2_g'], p['ln2_b'])
            m = h2 @ p['w1'] + p['b1']
            m = m * jax.nn.sigmoid(1.702 * m)
            x = x + m @ p['w2'] + p['b2']
        x = _layernorm(x, params['lnf_g'], params['lnf_b'])
        eot = jnp.argmax(tokenized, axis=-1)
        return x[jnp.arange(B), eot] @ params['proj']


# -------------------------------------------------------------- init/main ---
def init_params(key, n_layers, L, D, num_heads, out_dim):
    keys = jax.random.split(key, n_layers + 3)
    s = 0.02
    layers = []
    for i in range(n_layers):
        ks = jax.random.split(keys[i], 8)
        layers.append(dict(
            ln1_g=1.0 + 0.1 * jax.random.normal(ks[0], (1, D), jnp.float32),
            ln1_b=0.1 * jax.random.normal(ks[1], (1, D), jnp.float32),
            wqkv=s * jax.random.normal(ks[2], (D, 3 * D), jnp.float32),
            bqkv=jnp.zeros((1, 3 * D), jnp.float32),
            wo=s * jax.random.normal(ks[3], (D, D), jnp.float32),
            bo=jnp.zeros((1, D), jnp.float32),
            ln2_g=1.0 + 0.1 * jax.random.normal(ks[4], (1, D), jnp.float32),
            ln2_b=0.1 * jax.random.normal(ks[5], (1, D), jnp.float32),
            w1=s * jax.random.normal(ks[6], (D, 4 * D), jnp.float32),
            b1=jnp.zeros((1, 4 * D), jnp.float32),
            w2=s * jax.random.normal(ks[7], (4 * D, D), jnp.float32),
            b2=jnp.zeros((1, D), jnp.float32),
        ))
    return dict(
        num_heads=num_heads,
        pos=0.01 * jax.random.normal(keys[n_layers], (L, D), jnp.float32),
        lnf_g=1.0 + 0.1 * jax.random.normal(keys[n_layers + 1], (1, D), jnp.float32),
        lnf_b=jnp.zeros((1, D), jnp.float32),
        proj=s * jax.random.normal(keys[n_layers + 2], (D, out_dim), jnp.float32),
        layers=layers,
    )


if __name__ == "__main__":
    B, L, D, H, LAYERS, OUT = 2, 8, 32, 4, 2, 16

    root = jax.random.PRNGKey(0)
    k_par, k_prm, k_tok = jax.random.split(root, 3)

    params = init_params(k_par, LAYERS, L, D, H, OUT)
    prompts = 0.1 * jax.random.normal(k_prm, (B, L, D), jnp.float32)

    # tokenized prompts: random ids with a CLIP-style EOT (max id) per row
    tokenized = jax.random.randint(k_tok, (B, L), 1, 100, dtype=jnp.int32)
    tokenized = tokenized.at[jnp.arange(B), jnp.array([5, 7])].set(49407)

    out = jax.block_until_ready(text_encoder(prompts, tokenized, params))
    assert out.shape == (B, OUT) and out.dtype == jnp.float32

    ref = jax.block_until_ready(reference(prompts, tokenized, params))
    max_err = float(jnp.max(jnp.abs(out - ref)))
    assert max_err < 2e-2, f"mismatch vs reference: {max_err}"

    print("KERNEL_OK")
</pallas_src>

<mosaic_0001>
module attributes {stable_mosaic.version = 11 : i64} {
  func.func @_encoder_kernel(%arg0: i32, %arg1: i32, %arg2: memref<16x32xf32, #tpu.memory_space<vmem>>, %arg3: memref<16x32xf32, #tpu.memory_space<vmem>>, %arg4: memref<8x8xf32, #tpu.memory_space<vmem>>, %arg5: memref<1x1x32xf32, #tpu.memory_space<vmem>>, %arg6: memref<1x1x32xf32, #tpu.memory_space<vmem>>, %arg7: memref<1x32x96xbf16, #tpu.memory_space<vmem>>, %arg8: memref<1x1x96xf32, #tpu.memory_space<vmem>>, %arg9: memref<1x32x32xbf16, #tpu.memory_space<vmem>>, %arg10: memref<1x1x32xf32, #tpu.memory_space<vmem>>, %arg11: memref<1x1x32xf32, #tpu.memory_space<vmem>>, %arg12: memref<1x1x32xf32, #tpu.memory_space<vmem>>, %arg13: memref<1x32x128xbf16, #tpu.memory_space<vmem>>, %arg14: memref<1x1x128xf32, #tpu.memory_space<vmem>>, %arg15: memref<1x128x32xbf16, #tpu.memory_space<vmem>>, %arg16: memref<1x1x32xf32, #tpu.memory_space<vmem>>, %arg17: memref<16x32xf32, #tpu.memory_space<vmem>>, %arg18: memref<16x32xf32, #tpu.memory_space<vmem>>, %arg19: memref<2x8x32xf32, #tpu.memory_space<vmem>>) attributes {dimension_semantics = [#tpu.dimension_semantics<parallel>, #tpu.dimension_semantics<arbitrary>], iteration_bounds = array<i64: 1, 2>, scalar_prefetch = 0 : i64, scratch_operands = 2 : i64, tpu.core_type = #tpu.core_type<tc>, window_params = [{transform_indices = @transform_0, window_bounds = array<i64: 16, 32>}, {pipeline_mode = #tpu.pipeline_mode<synchronous>, transform_indices = @transform_1, window_bounds = array<i64: 16, 32>}, {pipeline_mode = #tpu.pipeline_mode<synchronous>, transform_indices = @transform_2, window_bounds = array<i64: 8, 8>}, {transform_indices = @transform_3, window_bounds = array<i64: 1, 1, 32>}, {transform_indices = @transform_4, window_bounds = array<i64: 1, 1, 32>}, {transform_indices = @transform_5, window_bounds = array<i64: 1, 32, 96>}, {transform_indices = @transform_6, window_bounds = array<i64: 1, 1, 96>}, {transform_indices = @transform_7, window_bounds = array<i64: 1, 32, 32>}, {transform_indices = @transform_8, window_bounds = array<i64: 1, 1, 32>}, {transform_indices = @transform_9, window_bounds = array<i64: 1, 1, 32>}, {transform_indices = @transform_10, window_bounds = array<i64: 1, 1, 32>}, {transform_indices = @transform_11, window_bounds = array<i64: 1, 32, 128>}, {transform_indices = @transform_12, window_bounds = array<i64: 1, 1, 128>}, {transform_indices = @transform_13, window_bounds = array<i64: 1, 128, 32>}, {transform_indices = @transform_14, window_bounds = array<i64: 1, 1, 32>}, {transform_indices = @transform_15, window_bounds = array<i64: 16, 32>}]} {
    %c0_i32 = arith.constant 0 : i32
    %0 = arith.cmpi eq, %arg1, %c0_i32 : i32
    %1 = arith.extui %0 : i1 to i32
    %c0_i32_0 = arith.constant 0 : i32
    %2 = arith.cmpi ne, %1, %c0_i32_0 : i32
    scf.if %2 {
      %c0_90 = arith.constant 0 : index
      %c0_91 = arith.constant 0 : index
      %206 = vector.load %arg2[%c0_90, %c0_91] : memref<16x32xf32, #tpu.memory_space<vmem>>, vector<16x32xf32>
      %c0_92 = arith.constant 0 : index
      %c0_93 = arith.constant 0 : index
      %207 = vector.load %arg3[%c0_92, %c0_93] : memref<16x32xf32, #tpu.memory_space<vmem>>, vector<16x32xf32>
      %208 = arith.addf %206, %207 : vector<16x32xf32>
      %c0_94 = arith.constant 0 : index
      %c0_95 = arith.constant 0 : index
      %209 = vector.load %arg18[%c0_94, %c0_95] : memref<16x32xf32, #tpu.memory_space<vmem>>, vector<16x32xf32>
      tpu.vector_store %arg18[%c0_94, %c0_95], %208 {strides = array<i32>} : memref<16x32xf32, #tpu.memory_space<vmem>>, vector<16x32xf32>,
    } else {
    }
    %c0 = arith.constant 0 : index
    %c0_1 = arith.constant 0 : index
    %3 = vector.load %arg18[%c0, %c0_1] : memref<16x32xf32, #tpu.memory_space<vmem>>, vector<16x32xf32>
    %c0_2 = arith.constant 0 : index
    %c0_3 = arith.constant 0 : index
    %c0_4 = arith.constant 0 : index
    %4 = vector.load %arg5[%c0_2, %c0_3, %c0_4] : memref<1x1x32xf32, #tpu.memory_space<vmem>>, vector<1x1x32xf32>
    %5 = vector.shape_cast %4 : vector<1x1x32xf32> to vector<1x32xf32>
    %c0_5 = arith.constant 0 : index
    %c0_6 = arith.constant 0 : index
    %c0_7 = arith.constant 0 : index
    %6 = vector.load %arg6[%c0_5, %c0_6, %c0_7] : memref<1x1x32xf32, #tpu.memory_space<vmem>>, vector<1x1x32xf32>
    %7 = vector.shape_cast %6 : vector<1x1x32xf32> to vector<1x32xf32>
    %cst = arith.constant dense<0.000000e+00> : vector<16xf32>
    %8 = vector.multi_reduction <add>, %3, %cst [1] : vector<16x32xf32> to vector<16xf32>
    %9 = vector.shape_cast %8 : vector<16xf32> to vector<16x1xf32>
    %cst_8 = arith.constant 3.200000e+01 : f32
    %10 = vector.broadcast %cst_8 : f32 to vector<16x1xf32>
    %11 = arith.divf %9, %10 : vector<16x1xf32>
    %12 = vector.broadcast %11 : vector<16x1xf32> to vector<16x32xf32>
    %13 = arith.subf %3, %12 : vector<16x32xf32>
    %14 = arith.mulf %13, %13 : vector<16x32xf32>
    %cst_9 = arith.constant dense<0.000000e+00> : vector<16xf32>
    %15 = vector.multi_reduction <add>, %14, %cst_9 [1] : vector<16x32xf32> to vector<16xf32>
    %16 = vector.shape_cast %15 : vector<16xf32> to vector<16x1xf32>
    %cst_10 = arith.constant 3.200000e+01 : f32
    %17 = vector.broadcast %cst_10 : f32 to vector<16x1xf32>
    %18 = arith.divf %16, %17 : vector<16x1xf32>
    %19 = vector.broadcast %11 : vector<16x1xf32> to vector<16x32xf32>
    %20 = arith.subf %3, %19 : vector<16x32xf32>
    %cst_11 = arith.constant 9.99999974E-6 : f32
    %21 = vector.broadcast %cst_11 : f32 to vector<16x1xf32>
    %22 = arith.addf %18, %21 : vector<16x1xf32>
    %23 = math.rsqrt %22 : vector<16x1xf32>
    %24 = vector.broadcast %23 : vector<16x1xf32> to vector<16x32xf32>
    %25 = arith.mulf %20, %24 : vector<16x32xf32>
    %26 = vector.broadcast %5 : vector<1x32xf32> to vector<16x32xf32>
    %27 = arith.mulf %25, %26 : vector<16x32xf32>
    %28 = vector.broadcast %7 : vector<1x32xf32> to vector<16x32xf32>
    %29 = arith.addf %27, %28 : vector<16x32xf32>
    %30 = arith.truncf %29 : vector<16x32xf32> to vector<16x32xbf16>
    %c0_12 = arith.constant 0 : index
    %c0_13 = arith.constant 0 : index
    %c0_14 = arith.constant 0 : index
    %31 = vector.load %arg7[%c0_12, %c0_13, %c0_14] : memref<1x32x96xbf16, #tpu.memory_space<vmem>>, vector<1x32x96xbf16>
    %32 = vector.shape_cast %31 : vector<1x32x96xbf16> to vector<32x96xbf16>
    %cst_15 = arith.constant dense<0.000000e+00> : vector<16x96xf32>
    %33 = tpu.matmul %30, %32, %cst_15 {dimension_numbers = #tpu.dot_dimension_numbers<[1], [0], [0], [1], [0, 0, 1, 1], [], []>} : vector<16x32xbf16>, vector<32x96xbf16>, vector<16x96xf32> -> vector<16x96xf32>
    %c0_16 = arith.constant 0 : index
    %c0_17 = arith.constant 0 : index
    %c0_18 = arith.constant 0 : index
    %34 = vector.load %arg8[%c0_16, %c0_17, %c0_18] : memref<1x1x96xf32, #tpu.memory_space<vmem>>, vector<1x1x96xf32>
    %35 = vector.shape_cast %34 : vector<1x1x96xf32> to vector<1x96xf32>
    %36 = vector.broadcast %35 : vector<1x96xf32> to vector<16x96xf32>
    %37 = arith.addf %33, %36 : vector<16x96xf32>
    %38 = vector.shape_cast %37 : vector<16x96xf32> to vector<2x8x96xf32>
    %c0_19 = arith.constant 0 : index
    %c0_20 = arith.constant 0 : index
    %39 = vector.load %arg4[%c0_19, %c0_20] : memref<8x8xf32, #tpu.memory_space<vmem>>, vector<8x8xf32>
    %40 = vector.extract_strided_slice %38 {offsets = [0, 0, 0], sizes = [2, 8, 8], strides = [1, 1, 1]} : vector<2x8x96xf32> to vector<2x8x8xf32>
    %cst_21 = arith.constant 0.353553385 : f32
    %41 = vector.broadcast %cst_21 : f32 to vector<2x8x8xf32>
    %42 = arith.mulf %40, %41 : vector<2x8x8xf32>
    %43 = arith.truncf %42 : vector<2x8x8xf32> to vector<2x8x8xbf16>
    %44 = vector.extract_strided_slice %38 {offsets = [0, 0, 32], sizes = [2, 8, 8], strides = [1, 1, 1]} : vector<2x8x96xf32> to vector<2x8x8xf32>
    %45 = arith.truncf %44 : vector<2x8x8xf32> to vector<2x8x8xbf16>
    %46 = vector.extract_strided_slice %38 {offsets = [0, 0, 64], sizes = [2, 8, 8], strides = [1, 1, 1]} : vector<2x8x96xf32> to vector<2x8x8xf32>
    %47 = arith.truncf %46 : vector<2x8x8xf32> to vector<2x8x8xbf16>
    "tpu.trace_start"() <{level = 10 : i32, message = "bqd,bkd->bqk"}> : () -> ()
    %cst_22 = arith.constant dense<0.000000e+00> : vector<2x8x8xf32>
    %48 = tpu.matmul %43, %45, %cst_22 {dimension_numbers = #tpu.dot_dimension_numbers<[2], [2], [1], [1], [0, 0, 0, 1, 1, 1], [0], [0]>} : vector<2x8x8xbf16>, vector<2x8x8xbf16>, vector<2x8x8xf32> -> vector<2x8x8xf32>
    "tpu.trace_stop"() : () -> ()
    %49 = vector.shape_cast %39 : vector<8x8xf32> to vector<1x8x8xf32>
    %50 = vector.broadcast %49 : vector<1x8x8xf32> to vector<2x8x8xf32>
    %51 = arith.addf %48, %50 : vector<2x8x8xf32>
    %cst_23 = arith.constant dense<0xFF800000> : vector<2x8xf32>
    %52 = vector.multi_reduction <maximumf>, %51, %cst_23 [2] : vector<2x8x8xf32> to vector<2x8xf32>
    %53 = vector.shape_cast %52 : vector<2x8xf32> to vector<2x8x1xf32>
    %54 = vector.broadcast %53 : vector<2x8x1xf32> to vector<2x8x8xf32>
    %55 = arith.subf %51, %54 : vector<2x8x8xf32>
    %56 = math.exp %55 : vector<2x8x8xf32>
    %cst_24 = arith.constant dense<0.000000e+00> : vector<2x8xf32>
    %57 = vector.multi_reduction <add>, %56, %cst_24 [2] : vector<2x8x8xf32> to vector<2x8xf32>
    %58 = vector.shape_cast %57 : vector<2x8xf32> to vector<2x8x1xf32>
    %59 = tpu.reciprocal %58 {approx = true} : vector<2x8x1xf32> -> vector<2x8x1xf32>
    %60 = vector.broadcast %59 : vector<2x8x1xf32> to vector<2x8x8xf32>
    %61 = arith.mulf %56, %60 : vector<2x8x8xf32>
    %62 = arith.truncf %61 : vector<2x8x8xf32> to vector<2x8x8xbf16>
    "tpu.trace_start"() <{level = 10 : i32, message = "bqk,bkd->bqd"}> : () -> ()
    %cst_25 = arith.constant dense<0.000000e+00> : vector<2x8x8xf32>
    %63 = tpu.matmul %62, %47, %cst_25 {dimension_numbers = #tpu.dot_dimension_numbers<[2], [1], [1], [2], [0, 0, 0, 1, 1, 2], [0], [0]>} : vector<2x8x8xbf16>, vector<2x8x8xbf16>, vector<2x8x8xf32> -> vector<2x8x8xf32>
    "tpu.trace_stop"() : () -> ()
    %c0_26 = arith.constant 0 : index
    %c0_27 = arith.constant 0 : index
    %c0_28 = arith.constant 0 : index
    %64 = vector.load %arg19[%c0_26, %c0_27, %c0_28] : memref<2x8x32xf32, #tpu.memory_space<vmem>>, vector<2x8x8xf32>
    tpu.vector_store %arg19[%c0_26, %c0_27, %c0_28], %63 {strides = array<i32>} : memref<2x8x32xf32, #tpu.memory_space<vmem>>, vector<2x8x8xf32>,
    %65 = vector.extract_strided_slice %38 {offsets = [0, 0, 8], sizes = [2, 8, 8], strides = [1, 1, 1]} : vector<2x8x96xf32> to vector<2x8x8xf32>
    %cst_29 = arith.constant 0.353553385 : f32
    %66 = vector.broadcast %cst_29 : f32 to vector<2x8x8xf32>
    %67 = arith.mulf %65, %66 : vector<2x8x8xf32>
    %68 = arith.truncf %67 : vector<2x8x8xf32> to vector<2x8x8xbf16>
    %69 = vector.extract_strided_slice %38 {offsets = [0, 0, 40], sizes = [2, 8, 8], strides = [1, 1, 1]} : vector<2x8x96xf32> to vector<2x8x8xf32>
    %70 = arith.truncf %69 : vector<2x8x8xf32> to vector<2x8x8xbf16>
    %71 = vector.extract_strided_slice %38 {offsets = [0, 0, 72], sizes = [2, 8, 8], strides = [1, 1, 1]} : vector<2x8x96xf32> to vector<2x8x8xf32>
    %72 = arith.truncf %71 : vector<2x8x8xf32> to vector<2x8x8xbf16>
    "tpu.trace_start"() <{level = 10 : i32, message = "bqd,bkd->bqk"}> : () -> ()
    %cst_30 = arith.constant dense<0.000000e+00> : vector<2x8x8xf32>
    %73 = tpu.matmul %68, %70, %cst_30 {dimension_numbers = #tpu.dot_dimension_numbers<[2], [2], [1], [1], [0, 0, 0, 1, 1, 1], [0], [0]>} : vector<2x8x8xbf16>, vector<2x8x8xbf16>, vector<2x8x8xf32> -> vector<2x8x8xf32>
    "tpu.trace_stop"() : () -> ()
    %74 = vector.shape_cast %39 : vector<8x8xf32> to vector<1x8x8xf32>
    %75 = vector.broadcast %74 : vector<1x8x8xf32> to vector<2x8x8xf32>
    %76 = arith.addf %73, %75 : vector<2x8x8xf32>
    %cst_31 = arith.constant dense<0xFF800000> : vector<2x8xf32>
    %77 = vector.multi_reduction <maximumf>, %76, %cst_31 [2] : vector<2x8x8xf32> to vector<2x8xf32>
    %78 = vector.shape_cast %77 : vector<2x8xf32> to vector<2x8x1xf32>
    %79 = vector.broadcast %78 : vector<2x8x1xf32> to vector<2x8x8xf32>
    %80 = arith.subf %76, %79 : vector<2x8x8xf32>
    %81 = math.exp %80 : vector<2x8x8xf32>
    %cst_32 = arith.constant dense<0.000000e+00> : vector<2x8xf32>
    %82 = vector.multi_reduction <add>, %81, %cst_32 [2] : vector<2x8x8xf32> to vector<2x8xf32>
    %83 = vector.shape_cast %82 : vector<2x8xf32> to vector<2x8x1xf32>
    %84 = tpu.reciprocal %83 {approx = true} : vector<2x8x1xf32> -> vector<2x8x1xf32>
    %85 = vector.broadcast %84 : vector<2x8x1xf32> to vector<2x8x8xf32>
    %86 = arith.mulf %81, %85 : vector<2x8x8xf32>
    %87 = arith.truncf %86 : vector<2x8x8xf32> to vector<2x8x8xbf16>
    "tpu.trace_start"() <{level = 10 : i32, message = "bqk,bkd->bqd"}> : () -> ()
    %cst_33 = arith.constant dense<0.000000e+00> : vector<2x8x8xf32>
    %88 = tpu.matmul %87, %72, %cst_33 {dimension_numbers = #tpu.dot_dimension_numbers<[2], [1], [1], [2], [0, 0, 0, 1, 1, 2], [0], [0]>} : vector<2x8x8xbf16>, vector<2x8x8xbf16>, vector<2x8x8xf32> -> vector<2x8x8xf32>
    "tpu.trace_stop"() : () -> ()
    %c0_34 = arith.constant 0 : index
    %c0_35 = arith.constant 0 : index
    %c8 = arith.constant 8 : index
    %89 = vector.load %arg19[%c0_34, %c0_35, %c8] : memref<2x8x32xf32, #tpu.memory_space<vmem>>, vector<2x8x8xf32>
    tpu.vector_store %arg19[%c0_34, %c0_35, %c8], %88 {strides = array<i32>} : memref<2x8x32xf32, #tpu.memory_space<vmem>>, vector<2x8x8xf32>,
    %90 = vector.extract_strided_slice %38 {offsets = [0, 0, 16], sizes = [2, 8, 8], strides = [1, 1, 1]} : vector<2x8x96xf32> to vector<2x8x8xf32>
    %cst_36 = arith.constant 0.353553385 : f32
    %91 = vector.broadcast %cst_36 : f32 to vector<2x8x8xf32>
    %92 = arith.mulf %90, %91 : vector<2x8x8xf32>
    %93 = arith.truncf %92 : vector<2x8x8xf32> to vector<2x8x8xbf16>
    %94 = vector.extract_strided_slice %38 {offsets = [0, 0, 48], sizes = [2, 8, 8], strides = [1, 1, 1]} : vector<2x8x96xf32> to vector<2x8x8xf32>
    %95 = arith.truncf %94 : vector<2x8x8xf32> to vector<2x8x8xbf16>
    %96 = vector.extract_strided_slice %38 {offsets = [0, 0, 80], sizes = [2, 8, 8], strides = [1, 1, 1]} : vector<2x8x96xf32> to vector<2x8x8xf32>
    %97 = arith.truncf %96 : vector<2x8x8xf32> to vector<2x8x8xbf16>
    "tpu.trace_start"() <{level = 10 : i32, message = "bqd,bkd->bqk"}> : () -> ()
    %cst_37 = arith.constant dense<0.000000e+00> : vector<2x8x8xf32>
    %98 = tpu.matmul %93, %95, %cst_37 {dimension_numbers = #tpu.dot_dimension_numbers<[2], [2], [1], [1], [0, 0, 0, 1, 1, 1], [0], [0]>} : vector<2x8x8xbf16>, vector<2x8x8xbf16>, vector<2x8x8xf32> -> vector<2x8x8xf32>
    "tpu.trace_stop"() : () -> ()
    %99 = vector.shape_cast %39 : vector<8x8xf32> to vector<1x8x8xf32>
    %100 = vector.broadcast %99 : vector<1x8x8xf32> to vector<2x8x8xf32>
    %101 = arith.addf %98, %100 : vector<2x8x8xf32>
    %cst_38 = arith.constant dense<0xFF800000> : vector<2x8xf32>
    %102 = vector.multi_reduction <maximumf>, %101, %cst_38 [2] : vector<2x8x8xf32> to vector<2x8xf32>
    %103 = vector.shape_cast %102 : vector<2x8xf32> to vector<2x8x1xf32>
    %104 = vector.broadcast %103 : vector<2x8x1xf32> to vector<2x8x8xf32>
    %105 = arith.subf %101, %104 : vector<2x8x8xf32>
    %106 = math.exp %105 : vector<2x8x8xf32>
    %cst_39 = arith.constant dense<0.000000e+00> : vector<2x8xf32>
    %107 = vector.multi_reduction <add>, %106, %cst_39 [2] : vector<2x8x8xf32> to vector<2x8xf32>
    %108 = vector.shape_cast %107 : vector<2x8xf32> to vector<2x8x1xf32>
    %109 = tpu.reciprocal %108 {approx = true} : vector<2x8x1xf32> -> vector<2x8x1xf32>
    %110 = vector.broadcast %109 : vector<2x8x1xf32> to vector<2x8x8xf32>
    %111 = arith.mulf %106, %110 : vector<2x8x8xf32>
    %112 = arith.truncf %111 : vector<2x8x8xf32> to vector<2x8x8xbf16>
    "tpu.trace_start"() <{level = 10 : i32, message = "bqk,bkd->bqd"}> : () -> ()
    %cst_40 = arith.constant dense<0.000000e+00> : vector<2x8x8xf32>
    %113 = tpu.matmul %112, %97, %cst_40 {dimension_numbers = #tpu.dot_dimension_numbers<[2], [1], [1], [2], [0, 0, 0, 1, 1, 2], [0], [0]>} : vector<2x8x8xbf16>, vector<2x8x8xbf16>, vector<2x8x8xf32> -> vector<2x8x8xf32>
    "tpu.trace_stop"() : () -> ()
    %c0_41 = arith.constant 0 : index
    %c0_42 = arith.constant 0 : index
    %c16 = arith.constant 16 : index
    %114 = vector.load %arg19[%c0_41, %c0_42, %c16] : memref<2x8x32xf32, #tpu.memory_space<vmem>>, vector<2x8x8xf32>
    tpu.vector_store %arg19[%c0_41, %c0_42, %c16], %113 {strides = array<i32>} : memref<2x8x32xf32, #tpu.memory_space<vmem>>, vector<2x8x8xf32>,
    %115 = vector.extract_strided_slice %38 {offsets = [0, 0, 24], sizes = [2, 8, 8], strides = [1, 1, 1]} : vector<2x8x96xf32> to vector<2x8x8xf32>
    %cst_43 = arith.constant 0.353553385 : f32
    %116 = vector.broadcast %cst_43 : f32 to vector<2x8x8xf32>
    %117 = arith.mulf %115, %116 : vector<2x8x8xf32>
    %118 = arith.truncf %117 : vector<2x8x8xf32> to vector<2x8x8xbf16>
    %119 = vector.extract_strided_slice %38 {offsets = [0, 0, 56], sizes = [2, 8, 8], strides = [1, 1, 1]} : vector<2x8x96xf32> to vector<2x8x8xf32>
    %120 = arith.truncf %119 : vector<2x8x8xf32> to vector<2x8x8xbf16>
    %121 = vector.extract_strided_slice %38 {offsets = [0, 0, 88], sizes = [2, 8, 8], strides = [1, 1, 1]} : vector<2x8x96xf32> to vector<2x8x8xf32>
    %122 = arith.truncf %121 : vector<2x8x8xf32> to vector<2x8x8xbf16>
    "tpu.trace_start"() <{level = 10 : i32, message = "bqd,bkd->bqk"}> : () -> ()
    %cst_44 = arith.constant dense<0.000000e+00> : vector<2x8x8xf32>
    %123 = tpu.matmul %118, %120, %cst_44 {dimension_numbers = #tpu.dot_dimension_numbers<[2], [2], [1], [1], [0, 0, 0, 1, 1, 1], [0], [0]>} : vector<2x8x8xbf16>, vector<2x8x8xbf16>, vector<2x8x8xf32> -> vector<2x8x8xf32>
    "tpu.trace_stop"() : () -> ()
    %124 = vector.shape_cast %39 : vector<8x8xf32> to vector<1x8x8xf32>
    %125 = vector.broadcast %124 : vector<1x8x8xf32> to vector<2x8x8xf32>
    %126 = arith.addf %123, %125 : vector<2x8x8xf32>
    %cst_45 = arith.constant dense<0xFF800000> : vector<2x8xf32>
    %127 = vector.multi_reduction <maximumf>, %126, %cst_45 [2] : vector<2x8x8xf32> to vector<2x8xf32>
    %128 = vector.shape_cast %127 : vector<2x8xf32> to vector<2x8x1xf32>
    %129 = vector.broadcast %128 : vector<2x8x1xf32> to vector<2x8x8xf32>
    %130 = arith.subf %126, %129 : vector<2x8x8xf32>
    %131 = math.exp %130 : vector<2x8x8xf32>
    %cst_46 = arith.constant dense<0.000000e+00> : vector<2x8xf32>
    %132 = vector.multi_reduction <add>, %131, %cst_46 [2] : vector<2x8x8xf32> to vector<2x8xf32>
    %133 = vector.shape_cast %132 : vector<2x8xf32> to vector<2x8x1xf32>
    %134 = tpu.reciprocal %133 {approx = true} : vector<2x8x1xf32> -> vector<2x8x1xf32>
    %135 = vector.broadcast %134 : vector<2x8x1xf32> to vector<2x8x8xf32>
    %136 = arith.mulf %131, %135 : vector<2x8x8xf32>
    %137 = arith.truncf %136 : vector<2x8x8xf32> to vector<2x8x8xbf16>
    "tpu.trace_start"() <{level = 10 : i32, message = "bqk,bkd->bqd"}> : () -> ()
    %cst_47 = arith.constant dense<0.000000e+00> : vector<2x8x8xf32>
    %138 = tpu.matmul %137, %122, %cst_47 {dimension_numbers = #tpu.dot_dimension_numbers<[2], [1], [1], [2], [0, 0, 0, 1, 1, 2], [0], [0]>} : vector<2x8x8xbf16>, vector<2x8x8xbf16>, vector<2x8x8xf32> -> vector<2x8x8xf32>
    "tpu.trace_stop"() : () -> ()
    %c0_48 = arith.constant 0 : index
    %c0_49 = arith.constant 0 : index
    %c24 = arith.constant 24 : index
    %139 = vector.load %arg19[%c0_48, %c0_49, %c24] : memref<2x8x32xf32, #tpu.memory_space<vmem>>, vector<2x8x8xf32>
    tpu.vector_store %arg19[%c0_48, %c0_49, %c24], %138 {strides = array<i32>} : memref<2x8x32xf32, #tpu.memory_space<vmem>>, vector<2x8x8xf32>,
    %c0_50 = arith.constant 0 : index
    %c0_51 = arith.constant 0 : index
    %c0_52 = arith.constant 0 : index
    %140 = vector.load %arg19[%c0_50, %c0_51, %c0_52] : memref<2x8x32xf32, #tpu.memory_space<vmem>>, vector<2x8x32xf32>
    %141 = vector.shape_cast %140 : vector<2x8x32xf32> to vector<16x32xf32>
    %142 = arith.truncf %141 : vector<16x32xf32> to vector<16x32xbf16>
    %c0_53 = arith.constant 0 : index
    %c0_54 = arith.constant 0 : index
    %c0_55 = arith.constant 0 : index
    %143 = vector.load %arg9[%c0_53, %c0_54, %c0_55] : memref<1x32x32xbf16, #tpu.memory_space<vmem>>, vector<1x32x32xbf16>
    %144 = vector.shape_cast %143 : vector<1x32x32xbf16> to vector<32x32xbf16>
    %cst_56 = arith.constant dense<0.000000e+00> : vector<16x32xf32>
    %145 = tpu.matmul %142, %144, %cst_56 {dimension_numbers = #tpu.dot_dimension_numbers<[1], [0], [0], [1], [0, 0, 1, 1], [], []>} : vector<16x32xbf16>, vector<32x32xbf16>, vector<16x32xf32> -> vector<16x32xf32>
    %146 = arith.addf %3, %145 : vector<16x32xf32>
    %c0_57 = arith.constant 0 : index
    %c0_58 = arith.constant 0 : index
    %c0_59 = arith.constant 0 : index
    %147 = vector.load %arg10[%c0_57, %c0_58, %c0_59] : memref<1x1x32xf32, #tpu.memory_space<vmem>>, vector<1x1x32xf32>
    %148 = vector.shape_cast %147 : vector<1x1x32xf32> to vector<1x32xf32>
    %149 = vector.broadcast %148 : vector<1x32xf32> to vector<16x32xf32>
    %150 = arith.addf %146, %149 : vector<16x32xf32>
    %c0_60 = arith.constant 0 : index
    %c0_61 = arith.constant 0 : index
    %c0_62 = arith.constant 0 : index
    %151 = vector.load %arg11[%c0_60, %c0_61, %c0_62] : memref<1x1x32xf32, #tpu.memory_space<vmem>>, vector<1x1x32xf32>
    %152 = vector.shape_cast %151 : vector<1x1x32xf32> to vector<1x32xf32>
    %c0_63 = arith.constant 0 : index
    %c0_64 = arith.constant 0 : index
    %c0_65 = arith.constant 0 : index
    %153 = vector.load %arg12[%c0_63, %c0_64, %c0_65] : memref<1x1x32xf32, #tpu.memory_space<vmem>>, vector<1x1x32xf32>
    %154 = vector.shape_cast %153 : vector<1x1x32xf32> to vector<1x32xf32>
    %cst_66 = arith.constant dense<0.000000e+00> : vector<16xf32>
    %155 = vector.multi_reduction <add>, %150, %cst_66 [1] : vector<16x32xf32> to vector<16xf32>
    %156 = vector.shape_cast %155 : vector<16xf32> to vector<16x1xf32>
    %cst_67 = arith.constant 3.200000e+01 : f32
    %157 = vector.broadcast %cst_67 : f32 to vector<16x1xf32>
    %158 = arith.divf %156, %157 : vector<16x1xf32>
    %159 = vector.broadcast %158 : vector<16x1xf32> to vector<16x32xf32>
    %160 = arith.subf %150, %159 : vector<16x32xf32>
    %161 = arith.mulf %160, %160 : vector<16x32xf32>
    %cst_68 = arith.constant dense<0.000000e+00> : vector<16xf32>
    %162 = vector.multi_reduction <add>, %161, %cst_68 [1] : vector<16x32xf32> to vector<16xf32>
    %163 = vector.shape_cast %162 : vector<16xf32> to vector<16x1xf32>
    %cst_69 = arith.constant 3.200000e+01 : f32
    %164 = vector.broadcast %cst_69 : f32 to vector<16x1xf32>
    %165 = arith.divf %163, %164 : vector<16x1xf32>
    %166 = vector.broadcast %158 : vector<16x1xf32> to vector<16x32xf32>
    %167 = arith.subf %150, %166 : vector<16x32xf32>
    %cst_70 = arith.constant 9.99999974E-6 : f32
    %168 = vector.broadcast %cst_70 : f32 to vector<16x1xf32>
    %169 = arith.addf %165, %168 : vector<16x1xf32>
    %170 = math.rsqrt %169 : vector<16x1xf32>
    %171 = vector.broadcast %170 : vector<16x1xf32> to vector<16x32xf32>
    %172 = arith.mulf %167, %171 : vector<16x32xf32>
    %173 = vector.broadcast %152 : vector<1x32xf32> to vector<16x32xf32>
    %174 = arith.mulf %172, %173 : vector<16x32xf32>
    %175 = vector.broadcast %154 : vector<1x32xf32> to vector<16x32xf32>
    %176 = arith.addf %174, %175 : vector<16x32xf32>
    %177 = arith.truncf %176 : vector<16x32xf32> to vector<16x32xbf16>
    %c0_71 = arith.constant 0 : index
    %c0_72 = arith.constant 0 : index
    %c0_73 = arith.constant 0 : index
    %178 = vector.load %arg13[%c0_71, %c0_72, %c0_73] : memref<1x32x128xbf16, #tpu.memory_space<vmem>>, vector<1x32x128xbf16>
    %179 = vector.shape_cast %178 : vector<1x32x128xbf16> to vector<32x128xbf16>
    %cst_74 = arith.constant dense<0.000000e+00> : vector<16x128xf32>
    %180 = tpu.matmul %177, %179, %cst_74 {dimension_numbers = #tpu.dot_dimension_numbers<[1], [0], [0], [1], [0, 0, 1, 1], [], []>} : vector<16x32xbf16>, vector<32x128xbf16>, vector<16x128xf32> -> vector<16x128xf32>
    %c0_75 = arith.constant 0 : index
    %c0_76 = arith.constant 0 : index
    %c0_77 = arith.constant 0 : index
    %181 = vector.load %arg14[%c0_75, %c0_76, %c0_77] : memref<1x1x128xf32, #tpu.memory_space<vmem>>, vector<1x1x128xf32>
    %182 = vector.shape_cast %181 : vector<1x1x128xf32> to vector<1x128xf32>
    %183 = vector.broadcast %182 : vector<1x128xf32> to vector<16x128xf32>
    %184 = arith.addf %180, %183 : vector<16x128xf32>
    %cst_78 = arith.constant 1.702000e+00 : f32
    %185 = vector.broadcast %cst_78 : f32 to vector<16x128xf32>
    %186 = arith.mulf %185, %184 : vector<16x128xf32>
    %187 = arith.negf %186 : vector<16x128xf32>
    %188 = math.exp %187 : vector<16x128xf32>
    %cst_79 = arith.constant 1.000000e+00 : f32
    %189 = vector.broadcast %cst_79 : f32 to vector<16x128xf32>
    %190 = arith.addf %189, %188 : vector<16x128xf32>
    %191 = arith.divf %189, %190 : vector<16x128xf32>
    %192 = arith.mulf %184, %191 : vector<16x128xf32>
    %193 = arith.truncf %192 : vector<16x128xf32> to vector<16x128xbf16>
    %c0_80 = arith.constant 0 : index
    %c0_81 = arith.constant 0 : index
    %c0_82 = arith.constant 0 : index
    %194 = vector.load %arg15[%c0_80, %c0_81, %c0_82] : memref<1x128x32xbf16, #tpu.memory_space<vmem>>, vector<1x128x32xbf16>
    %195 = vector.shape_cast %194 : vector<1x128x32xbf16> to vector<128x32xbf16>
    %cst_83 = arith.constant dense<0.000000e+00> : vector<16x32xf32>
    %196 = tpu.matmul %193, %195, %cst_83 {dimension_numbers = #tpu.dot_dimension_numbers<[1], [0], [0], [1], [0, 0, 1, 1], [], []>} : vector<16x128xbf16>, vector<128x32xbf16>, vector<16x32xf32> -> vector<16x32xf32>
    %c0_84 = arith.constant 0 : index
    %c0_85 = arith.constant 0 : index
    %c0_86 = arith.constant 0 : index
    %197 = vector.load %arg16[%c0_84, %c0_85, %c0_86] : memref<1x1x32xf32, #tpu.memory_space<vmem>>, vector<1x1x32xf32>
    %198 = vector.shape_cast %197 : vector<1x1x32xf32> to vector<1x32xf32>
    %199 = vector.broadcast %198 : vector<1x32xf32> to vector<16x32xf32>
    %200 = arith.addf %196, %199 : vector<16x32xf32>
    %201 = arith.addf %150, %200 : vector<16x32xf32>
    %c0_87 = arith.constant 0 : index
    %c0_88 = arith.constant 0 : index
    %202 = vector.load %arg18[%c0_87, %c0_88] : memref<16x32xf32, #tpu.memory_space<vmem>>, vector<16x32xf32>
    tpu.vector_store %arg18[%c0_87, %c0_88], %201 {strides = array<i32>} : memref<16x32xf32, #tpu.memory_space<vmem>>, vector<16x32xf32>,
    %c1_i32 = arith.constant 1 : i32
    %203 = arith.cmpi eq, %arg1, %c1_i32 : i32
    %204 = arith.extui %203 : i1 to i32
    %c0_i32_89 = arith.constant 0 : i32
    %205 = arith.cmpi ne, %204, %c0_i32_89 : i32
    scf.if %205 {
      %c0_90 = arith.constant 0 : index
      %c0_91 = arith.constant 0 : index
      %206 = vector.load %arg17[%c0_90, %c0_91] : memref<16x32xf32, #tpu.memory_space<vmem>>, vector<16x32xf32>
      tpu.vector_store %arg17[%c0_90, %c0_91], %201 {strides = array<i32>} : memref<16x32xf32, #tpu.memory_space<vmem>>, vector<16x32xf32>,
    } else {
    }
    return
  }
  func.func @transform_0(%arg0: i32, %arg1: i32) -> (i32, i32) {
    %c0_i32 = arith.constant 0 : i32
    %c0_i32_0 = arith.constant 0 : i32
    return %arg0, %c0_i32 : i32, i32
  }
  func.func @transform_1(%arg0: i32, %arg1: i32) -> (i32, i32) {
    %c0_i32 = arith.constant 0 : i32
    %c0_i32_0 = arith.constant 0 : i32
    %c0_i32_1 = arith.constant 0 : i32
    return %c0_i32, %c0_i32_0 : i32, i32
  }
  func.func @transform_2(%arg0: i32, %arg1: i32) -> (i32, i32) {
    %c0_i32 = arith.constant 0 : i32
    %c0_i32_0 = arith.constant 0 : i32
    %c0_i32_1 = arith.constant 0 : i32
    return %c0_i32, %c0_i32_0 : i32, i32
  }
  func.func @transform_3(%arg0: i32, %arg1: i32) -> (i32, i32, i32) {
    %c0_i32 = arith.constant 0 : i32
    %c0_i32_0 = arith.constant 0 : i32
    %c0_i32_1 = arith.constant 0 : i32
    return %arg1, %c0_i32, %c0_i32_0 : i32, i32, i32
  }
  func.func @transform_4(%arg0: i32, %arg1: i32) -> (i32, i32, i32) {
    %c0_i32 = arith.constant 0 : i32
    %c0_i32_0 = arith.constant 0 : i32
    %c0_i32_1 = arith.constant 0 : i32
    return %arg1, %c0_i32, %c0_i32_0 : i32, i32, i32
  }
  func.func @transform_5(%arg0: i32, %arg1: i32) -> (i32, i32, i32) {
    %c0_i32 = arith.constant 0 : i32
    %c0_i32_0 = arith.constant 0 : i32
    %c0_i32_1 = arith.constant 0 : i32
    return %arg1, %c0_i32, %c0_i32_0 : i32, i32, i32
  }
  func.func @transform_6(%arg0: i32, %arg1: i32) -> (i32, i32, i32) {
    %c0_i32 = arith.constant 0 : i32
    %c0_i32_0 = arith.constant 0 : i32
    %c0_i32_1 = arith.constant 0 : i32
    return %arg1, %c0_i32, %c0_i32_0 : i32, i32, i32
  }
  func.func @transform_7(%arg0: i32, %arg1: i32) -> (i32, i32, i32) {
    %c0_i32 = arith.constant 0 : i32
    %c0_i32_0 = arith.constant 0 : i32
    %c0_i32_1 = arith.constant 0 : i32
    return %arg1, %c0_i32, %c0_i32_0 : i32, i32, i32
  }
  func.func @transform_8(%arg0: i32, %arg1: i32) -> (i32, i32, i32) {
    %c0_i32 = arith.constant 0 : i32
    %c0_i32_0 = arith.constant 0 : i32
    %c0_i32_1 = arith.constant 0 : i32
    return %arg1, %c0_i32, %c0_i32_0 : i32, i32, i32
  }
  func.func @transform_9(%arg0: i32, %arg1: i32) -> (i32, i32, i32) {
    %c0_i32 = arith.constant 0 : i32
    %c0_i32_0 = arith.constant 0 : i32
    %c0_i32_1 = arith.constant 0 : i32
    return %arg1, %c0_i32, %c0_i32_0 : i32, i32, i32
  }
  func.func @transform_10(%arg0: i32, %arg1: i32) -> (i32, i32, i32) {
    %c0_i32 = arith.constant 0 : i32
    %c0_i32_0 = arith.constant 0 : i32
    %c0_i32_1 = arith.constant 0 : i32
    return %arg1, %c0_i32, %c0_i32_0 : i32, i32, i32
  }
  func.func @transform_11(%arg0: i32, %arg1: i32) -> (i32, i32, i32) {
    %c0_i32 = arith.constant 0 : i32
    %c0_i32_0 = arith.constant 0 : i32
    %c0_i32_1 = arith.constant 0 : i32
    return %arg1, %c0_i32, %c0_i32_0 : i32, i32, i32
  }
  func.func @transform_12(%arg0: i32, %arg1: i32) -> (i32, i32, i32) {
    %c0_i32 = arith.constant 0 : i32
    %c0_i32_0 = arith.constant 0 : i32
    %c0_i32_1 = arith.constant 0 : i32
    return %arg1, %c0_i32, %c0_i32_0 : i32, i32, i32
  }
  func.func @transform_13(%arg0: i32, %arg1: i32) -> (i32, i32, i32) {
    %c0_i32 = arith.constant 0 : i32
    %c0_i32_0 = arith.constant 0 : i32
    %c0_i32_1 = arith.constant 0 : i32
    return %arg1, %c0_i32, %c0_i32_0 : i32, i32, i32
  }
  func.func @transform_14(%arg0: i32, %arg1: i32) -> (i32, i32, i32) {
    %c0_i32 = arith.constant 0 : i32
    %c0_i32_0 = arith.constant 0 : i32
    %c0_i32_1 = arith.constant 0 : i32
    return %arg1, %c0_i32, %c0_i32_0 : i32, i32, i32
  }
  func.func @transform_15(%arg0: i32, %arg1: i32) -> (i32, i32) {
    %c0_i32 = arith.constant 0 : i32
    %c0_i32_0 = arith.constant 0 : i32
    return %arg0, %c0_i32 : i32, i32
  }
}

</mosaic_0001>

<llo_original>
// kernel: tpu_custom_call.1
$region0: #{tpu_custom_call.1}
  #allocation0 [shape = 'u32[]', space=smem, size = 0x4, offset = 0x4, fixed_abs, tag = 'smem constant byte address 0x4 - core index']
  #allocation1 [shape = 'u32[144,128]{1,0:T(1,128)}', space=vmem, size = 0x12000, scoped, tag = 'internal scratch']
  #allocation2 [shape = 'f32[16,32]{1,0:T(8,128)}', space=vmem, size = 0x2000, scoped, tag = 'scratch operand']
  #allocation3 [shape = 'f32[2,8,32]{2,1,0:T(8,128)}', space=vmem, size = 0x2000, scoped, tag = 'scratch operand']
  %s0 = inlined_call_operand.vmem [shape: f32[16,32], index: 0, kind: input, shape index: {}]
  %s1 = inlined_call_operand.vmem [shape: f32[16,32], index: 1, kind: input, shape index: {}]
  %s2 = inlined_call_operand.vmem [shape: f32[8,8], index: 2, kind: input, shape index: {}]
  %s3 = inlined_call_operand.vmem [shape: f32[2,1,32], index: 3, kind: input, shape index: {}]
  %s4 = inlined_call_operand.vmem [shape: f32[2,1,32], index: 4, kind: input, shape index: {}]
  %s5 = inlined_call_operand.vmem [shape: bf16[2,32,96], index: 5, kind: input, shape index: {}]
  %s6 = inlined_call_operand.vmem [shape: f32[2,1,96], index: 6, kind: input, shape index: {}]
  %s7 = inlined_call_operand.vmem [shape: bf16[2,32,32], index: 7, kind: input, shape index: {}]
  %s8 = inlined_call_operand.vmem [shape: f32[2,1,32], index: 8, kind: input, shape index: {}]
  %s9 = inlined_call_operand.vmem [shape: f32[2,1,32], index: 9, kind: input, shape index: {}]
  %s10 = inlined_call_operand.vmem [shape: f32[2,1,32], index: 10, kind: input, shape index: {}]
  %s11 = inlined_call_operand.vmem [shape: bf16[2,32,128], index: 11, kind: input, shape index: {}]
  %s12 = inlined_call_operand.vmem [shape: f32[2,1,128], index: 12, kind: input, shape index: {}]
  %s13 = inlined_call_operand.vmem [shape: bf16[2,128,32], index: 13, kind: input, shape index: {}]
  %s14 = inlined_call_operand.vmem [shape: f32[2,1,32], index: 14, kind: input, shape index: {}]
  %s15 = inlined_call_operand.hbm [shape: f32[16,32], index: 15, kind: output, shape index: {}]
  %s16 = sld [smem:[#allocation0]]
  $region101: #{tpu_custom_call.1} parent=0
    _
  %s18 = ssub.s32 1, %s16
  %s19 = scalar_select 0, %s18, %s16
  $region1: #{tpu_custom_call.1} parent=0
    #allocation4 [shape = 'u8[8192]{0}', space=vmem, size = 0x2000, scoped, tag = 'output window, operand 0, single buffered']
    #allocation5 [shape = 's32[2]{0}', space=sflag, size = 0x8, scoped, tag = 'scoped memory for tpu_custom_call.1']
    %20 = vsyncpa [#allocation5], 0
    loop: start=0, step=1, limit=4
    $region2: #{tpu_custom_call.1} parent=1 // loop_pre_header
      _
    $region3: #{tpu_custom_call.1} parent=1 // loop_header
      %s22 = sphi 0, %s26
      %p23 = scmp.ge.s32.totalorder %s22, 4
      %s29 = sphi 0, %s41
      %s30 = sphi 0, %s37
      %s31 = sphi 0, %s29
      %s32 = sphi 0, %s30
      %s33 = sphi 0, %s31
      %s34 = sphi 0, %s32
      %s44 = sphi 0, %s46
      %s47 = sphi 0, %s44
      %s48 = sphi 0, %s47
      %s64 = sphi 0, %s48
      %s68 = sphi 0, %s68
      %s70 = sphi 0, %s68
      %s71 = sphi 0, %s70
      %s85 = sphi 0, %s71
      %s89 = sphi 0, %s89
      %s91 = sphi 0, %s89
      %s92 = sphi 0, %s91
      %s106 = sphi 0, %s92
      %s112 = sphi 0, %s114
      %s115 = sphi 0, %s112
      %s116 = sphi 0, %s115
      %s132 = sphi 0, %s116
      %s138 = sphi 0, %s140
      %s141 = sphi 0, %s138
      %s142 = sphi 0, %s141
      %s158 = sphi 0, %s142
      %s164 = sphi 0, %s166
      %s167 = sphi 0, %s164
      %s168 = sphi 0, %s167
      %s184 = sphi 0, %s168
      %s190 = sphi 0, %s192
      %s193 = sphi 0, %s190
      %s194 = sphi 0, %s193
      %s210 = sphi 0, %s194
      %s216 = sphi 0, %s218
      %s219 = sphi 0, %s216
      %s220 = sphi 0, %s219
      %s236 = sphi 0, %s220
      %s242 = sphi 0, %s244
      %s245 = sphi 0, %s242
      %s246 = sphi 0, %s245
      %s262 = sphi 0, %s246
      %s268 = sphi 0, %s270
      %s271 = sphi 0, %s268
      %s272 = sphi 0, %s271
      %s288 = sphi 0, %s272
      %s294 = sphi 0, %s296
      %s297 = sphi 0, %s294
      %s298 = sphi 0, %s297
      %s314 = sphi 0, %s298
      %s320 = sphi 0, %s322
      %s323 = sphi 0, %s320
      %s324 = sphi 0, %s323
      %s340 = sphi 0, %s324
      %s346 = sphi 0, %s348
      %s349 = sphi 0, %s346
      %s350 = sphi 0, %s349
      %s366 = sphi 0, %s350
      %s372 = sphi 0, %s374
      %s375 = sphi 0, %s372
      %s376 = sphi 0, %s375
      %s392 = sphi 0, %s376
      %s398 = sphi 0, %s400
      %s401 = sphi 0, %s398
      %s402 = sphi 0, %s401
      %s418 = sphi 0, %s402
      %s424 = sphi 0, %s426
      %s427 = sphi 0, %s424
      %s428 = sphi 0, %s427
      %s444 = sphi 0, %s428
    $region4: #{tpu_custom_call.1} parent=1 // loop_header_branch
      %25 = sbr.rel (%p23) target = $region8
    $region5: #{tpu_custom_call.1} parent=1 // loop_body
      %s27 = ssub.s32 %s22, 1
      %s28 = ssub.s32 %s22, 2
      %s35 = sadd.s32 1, %s30
      %p36 = scmp.ge.s32.totalorder %s35, 2
      %s37 = scalar_select %p36, 0, %s35
      %s38 = sadd.s32 1, %s29
      %s39 = scalar_select %p36, %s38, %s29
      %p40 = scmp.ge.s32.totalorder %s39, 1
      %s41 = scalar_select %p40, 0, %s39
      %s42 = ssub.s32 %s29, %s41
      %p43 = scmp.eq.s32.totalorder %s42, 0
      %s45 = sadd.s32 %s44, 1
      %s46 = scalar_select %p43, %s44, %s45
      %p49 = pneg %p43
      %p50 = scmp.eq.s32.totalorder %s22, 1
      %p51 = por %p49, %p50
      %p52 = scmp.ne.s32.totalorder %s44, %s47
      %p53 = scmp.eq.s32.totalorder %s22, 0
      %p54 = por %p52, %p53
      %p55 = scmp.ne.s32.totalorder %s44, %s47
      %p56 = scmp.eq.s32.totalorder %s27, 1
      %p57 = por %p55, %p56
      %p58 = scmp.ne.s32.totalorder %s47, %s48
      %p59 = scmp.eq.s32.totalorder %s27, 0
      %p60 = por %p58, %p59
      %p61 = scmp.ne.s32.totalorder %s47, %s48
      %p62 = scmp.eq.s32.totalorder %s28, 1
      %p63 = por %p61, %p62
      %p65 = scmp.ne.s32.totalorder %s48, %s64
      %p66 = scmp.eq.s32.totalorder %s28, 0
      %p67 = por %p65, %p66
      %s69 = sadd.s32 %s68, 1
      %p72 = scmp.eq.s32.totalorder %s22, 1
      %p73 = scmp.ne.s32.totalorder %s68, %s70
      %p74 = scmp.eq.s32.totalorder %s22, 0
      %p75 = por %p73, %p74
      %p76 = scmp.ne.s32.totalorder %s68, %s70
      %p77 = scmp.eq.s32.totalorder %s27, 1
      %p78 = por %p76, %p77
      %p79 = scmp.ne.s32.totalorder %s70, %s71
      %p80 = scmp.eq.s32.totalorder %s27, 0
      %p81 = por %p79, %p80
      %p82 = scmp.ne.s32.totalorder %s70, %s71
      %p83 = scmp.eq.s32.totalorder %s28, 1
      %p84 = por %p82, %p83
      %p86 = scmp.ne.s32.totalorder %s71, %s85
      %p87 = scmp.eq.s32.totalorder %s28, 0
      %p88 = por %p86, %p87
      %s90 = sadd.s32 %s89, 1
      %p93 = scmp.eq.s32.totalorder %s22, 1
      %p94 = scmp.ne.s32.totalorder %s89, %s91
      %p95 = scmp.eq.s32.totalorder %s22, 0
      %p96 = por %p94, %p95
      %p97 = scmp.ne.s32.totalorder %s89, %s91
      %p98 = scmp.eq.s32.totalorder %s27, 1
      %p99 = por %p97, %p98
      %p100 = scmp.ne.s32.totalorder %s91, %s92
      %p101 = scmp.eq.s32.totalorder %s27, 0
      %p102 = por %p100, %p101
      %p103 = scmp.ne.s32.totalorder %s91, %s92
      %p104 = scmp.eq.s32.totalorder %s28, 1
      %p105 = por %p103, %p104
      %p107 = scmp.ne.s32.totalorder %s92, %s106
      %p108 = scmp.eq.s32.totalorder %s28, 0
      %p109 = por %p107, %p108
      %s110 = ssub.s32 %s30, %s37
      %p111 = scmp.eq.s32.totalorder %s110, 0
      %s113 = sadd.s32 %s112, 1
      %s114 = scalar_select %p111, %s112, %s113
      %p117 = pneg %p111
      %p118 = scmp.eq.s32.totalorder %s22, 1
      %p119 = por %p117, %p118
      %p120 = scmp.ne.s32.totalorder %s112, %s115
      %p121 = scmp.eq.s32.totalorder %s22, 0
      %p122 = por %p120, %p121
      %p123 = scmp.ne.s32.totalorder %s112, %s115
      %p124 = scmp.eq.s32.totalorder %s27, 1
      %p125 = por %p123, %p124
      %p126 = scmp.ne.s32.totalorder %s115, %s116
      %p127 = scmp.eq.s32.totalorder %s27, 0
      %p128 = por %p126, %p127
      %p129 = scmp.ne.s32.totalorder %s115, %s116
      %p130 = scmp.eq.s32.totalorder %s28, 1
      %p131 = por %p129, %p130
      %p133 = scmp.ne.s32.totalorder %s116, %s132
      %p134 = scmp.eq.s32.totalorder %s28, 0
      %p135 = por %p133, %p134
      %s136 = ssub.s32 %s30, %s37
      %p137 = scmp.eq.s32.totalorder %s136, 0
      %s139 = sadd.s32 %s138, 1
      %s140 = scalar_select %p137, %s138, %s139
      %p143 = pneg %p137
      %p144 = scmp.eq.s32.totalorder %s22, 1
      %p145 = por %p143, %p144
      %p146 = scmp.ne.s32.totalorder %s138, %s141
      %p147 = scmp.eq.s32.totalorder %s22, 0
      %p148 = por %p146, %p147
      %p149 = scmp.ne.s32.totalorder %s138, %s141
      %p150 = scmp.eq.s32.totalorder %s27, 1
      %p151 = por %p149, %p150
      %p152 = scmp.ne.s32.totalorder %s141, %s142
      %p153 = scmp.eq.s32.totalorder %s27, 0
      %p154 = por %p152, %p153
      %p155 = scmp.ne.s32.totalorder %s141, %s142
      %p156 = scmp.eq.s32.totalorder %s28, 1
      %p157 = por %p155, %p156
      %p159 = scmp.ne.s32.totalorder %s142, %s158
      %p160 = scmp.eq.s32.totalorder %s28, 0
      %p161 = por %p159, %p160
      %s162 = ssub.s32 %s30, %s37
      %p163 = scmp.eq.s32.totalorder %s162, 0
      %s165 = sadd.s32 %s164, 1
      %s166 = scalar_select %p163, %s164, %s165
      %p169 = pneg %p163
      %p170 = scmp.eq.s32.totalorder %s22, 1
      %p171 = por %p169, %p170
      %p172 = scmp.ne.s32.totalorder %s164, %s167
      %p173 = scmp.eq.s32.totalorder %s22, 0
      %p174 = por %p172, %p173
      %p175 = scmp.ne.s32.totalorder %s164, %s167
      %p176 = scmp.eq.s32.totalorder %s27, 1
      %p177 = por %p175, %p176
      %p178 = scmp.ne.s32.totalorder %s167, %s168
      %p179 = scmp.eq.s32.totalorder %s27, 0
      %p180 = por %p178, %p179
      %p181 = scmp.ne.s32.totalorder %s167, %s168
      %p182 = scmp.eq.s32.totalorder %s28, 1
      %p183 = por %p181, %p182
      %p185 = scmp.ne.s32.totalorder %s168, %s184
      %p186 = scmp.eq.s32.totalorder %s28, 0
      %p187 = por %p185, %p186
      %s188 = ssub.s32 %s30, %s37
      %p189 = scmp.eq.s32.totalorder %s188, 0
      %s191 = sadd.s32 %s190, 1
      %s192 = scalar_select %p189, %s190, %s191
      %p195 = pneg %p189
      %p196 = scmp.eq.s32.totalorder %s22, 1
      %p197 = por %p195, %p196
      %p198 = scmp.ne.s32.totalorder %s190, %s193
      %p199 = scmp.eq.s32.totalorder %s22, 0
      %p200 = por %p198, %p199
      %p201 = scmp.ne.s32.totalorder %s190, %s193
      %p202 = scmp.eq.s32.totalorder %s27, 1
      %p203 = por %p201, %p202
      %p204 = scmp.ne.s32.totalorder %s193, %s194
      %p205 = scmp.eq.s32.totalorder %s27, 0
      %p206 = por %p204, %p205
      %p207 = scmp.ne.s32.totalorder %s193, %s194
      %p208 = scmp.eq.s32.totalorder %s28, 1
      %p209 = por %p207, %p208
      %p211 = scmp.ne.s32.totalorder %s194, %s210
      %p212 = scmp.eq.s32.totalorder %s28, 0
      %p213 = por %p211, %p212
      %s214 = ssub.s32 %s30, %s37
      %p215 = scmp.eq.s32.totalorder %s214, 0
      %s217 = sadd.s32 %s216, 1
      %s218 = scalar_select %p215, %s216, %s217
      %p221 = pneg %p215
      %p222 = scmp.eq.s32.totalorder %s22, 1
      %p223 = por %p221, %p222
      %p224 = scmp.ne.s32.totalorder %s216, %s219
      %p225 = scmp.eq.s32.totalorder %s22, 0
      %p226 = por %p224, %p225
      %p227 = scmp.ne.s32.totalorder %s216, %s219
      %p228 = scmp.eq.s32.totalorder %s27, 1
      %p229 = por %p227, %p228
      %p230 = scmp.ne.s32.totalorder %s219, %s220
      %p231 = scmp.eq.s32.totalorder %s27, 0
      %p232 = por %p230, %p231
      %p233 = scmp.ne.s32.totalorder %s219, %s220
      %p234 = scmp.eq.s32.totalorder %s28, 1
      %p235 = por %p233, %p234
      %p237 = scmp.ne.s32.totalorder %s220, %s236
      %p238 = scmp.eq.s32.totalorder %s28, 0
      %p239 = por %p237, %p238
      %s240 = ssub.s32 %s30, %s37
      %p241 = scmp.eq.s32.totalorder %s240, 0
      %s243 = sadd.s32 %s242, 1
      %s244 = scalar_select %p241, %s242, %s243
      %p247 = pneg %p241
      %p248 = scmp.eq.s32.totalorder %s22, 1
      %p249 = por %p247, %p248
      %p250 = scmp.ne.s32.totalorder %s242, %s245
      %p251 = scmp.eq.s32.totalorder %s22, 0
      %p252 = por %p250, %p251
      %p253 = scmp.ne.s32.totalorder %s242, %s245
      %p254 = scmp.eq.s32.totalorder %s27, 1
      %p255 = por %p253, %p254
      %p256 = scmp.ne.s32.totalorder %s245, %s246
      %p257 = scmp.eq.s32.totalorder %s27, 0
      %p258 = por %p256, %p257
      %p259 = scmp.ne.s32.totalorder %s245, %s246
      %p260 = scmp.eq.s32.totalorder %s28, 1
      %p261 = por %p259, %p260
      %p263 = scmp.ne.s32.totalorder %s246, %s262
      %p264 = scmp.eq.s32.totalorder %s28, 0
      %p265 = por %p263, %p264
      %s266 = ssub.s32 %s30, %s37
      %p267 = scmp.eq.s32.totalorder %s266, 0
      %s269 = sadd.s32 %s268, 1
      %s270 = scalar_select %p267, %s268, %s269
      %p273 = pneg %p267
      %p274 = scmp.eq.s32.totalorder %s22, 1
      %p275 = por %p273, %p274
      %p276 = scmp.ne.s32.totalorder %s268, %s271
      %p277 = scmp.eq.s32.totalorder %s22, 0
      %p278 = por %p276, %p277
      %p279 = scmp.ne.s32.totalorder %s268, %s271
      %p280 = scmp.eq.s32.totalorder %s27, 1
      %p281 = por %p279, %p280
      %p282 = scmp.ne.s32.totalorder %s271, %s272
      %p283 = scmp.eq.s32.totalorder %s27, 0
      %p284 = por %p282, %p283
      %p285 = scmp.ne.s32.totalorder %s271, %s272
      %p286 = scmp.eq.s32.totalorder %s28, 1
      %p287 = por %p285, %p286
      %p289 = scmp.ne.s32.totalorder %s272, %s288
      %p290 = scmp.eq.s32.totalorder %s28, 0
      %p291 = por %p289, %p290
      %s292 = ssub.s32 %s30, %s37
      %p293 = scmp.eq.s32.totalorder %s292, 0
      %s295 = sadd.s32 %s294, 1
      %s296 = scalar_select %p293, %s294, %s295
      %p299 = pneg %p293
      %p300 = scmp.eq.s32.totalorder %s22, 1
      %p301 = por %p299, %p300
      %p302 = scmp.ne.s32.totalorder %s294, %s297
      %p303 = scmp.eq.s32.totalorder %s22, 0
      %p304 = por %p302, %p303
      %p305 = scmp.ne.s32.totalorder %s294, %s297
      %p306 = scmp.eq.s32.totalorder %s27, 1
      %p307 = por %p305, %p306
      %p308 = scmp.ne.s32.totalorder %s297, %s298
      %p309 = scmp.eq.s32.totalorder %s27, 0
      %p310 = por %p308, %p309
      %p311 = scmp.ne.s32.totalorder %s297, %s298
      %p312 = scmp.eq.s32.totalorder %s28, 1
      %p313 = por %p311, %p312
      %p315 = scmp.ne.s32.totalorder %s298, %s314
      %p316 = scmp.eq.s32.totalorder %s28, 0
      %p317 = por %p315, %p316
      %s318 = ssub.s32 %s30, %s37
      %p319 = scmp.eq.s32.totalorder %s318, 0
      %s321 = sadd.s32 %s320, 1
      %s322 = scalar_select %p319, %s320, %s321
      %p325 = pneg %p319
      %p326 = scmp.eq.s32.totalorder %s22, 1
      %p327 = por %p325, %p326
      %p328 = scmp.ne.s32.totalorder %s320, %s323
      %p329 = scmp.eq.s32.totalorder %s22, 0
      %p330 = por %p328, %p329
      %p331 = scmp.ne.s32.totalorder %s320, %s323
      %p332 = scmp.eq.s32.totalorder %s27, 1
      %p333 = por %p331, %p332
      %p334 = scmp.ne.s32.totalorder %s323, %s324
      %p335 = scmp.eq.s32.totalorder %s27, 0
      %p336 = por %p334, %p335
      %p337 = scmp.ne.s32.totalorder %s323, %s324
      %p338 = scmp.eq.s32.totalorder %s28, 1
      %p339 = por %p337, %p338
      %p341 = scmp.ne.s32.totalorder %s324, %s340
      %p342 = scmp.eq.s32.totalorder %s28, 0
      %p343 = por %p341, %p342
      %s344 = ssub.s32 %s30, %s37
      %p345 = scmp.eq.s32.totalorder %s344, 0
      %s347 = sadd.s32 %s346, 1
      %s348 = scalar_select %p345, %s346, %s347
      %p351 = pneg %p345
      %p352 = scmp.eq.s32.totalorder %s22, 1
      %p353 = por %p351, %p352
      %p354 = scmp.ne.s32.totalorder %s346, %s349
      %p355 = scmp.eq.s32.totalorder %s22, 0
      %p356 = por %p354, %p355
      %p357 = scmp.ne.s32.totalorder %s346, %s349
      %p358 = scmp.eq.s32.totalorder %s27, 1
      %p359 = por %p357, %p358
      %p360 = scmp.ne.s32.totalorder %s349, %s350
      %p361 = scmp.eq.s32.totalorder %s27, 0
      %p362 = por %p360, %p361
      %p363 = scmp.ne.s32.totalorder %s349, %s350
      %p364 = scmp.eq.s32.totalorder %s28, 1
      %p365 = por %p363, %p364
      %p367 = scmp.ne.s32.totalorder %s350, %s366
      %p368 = scmp.eq.s32.totalorder %s28, 0
      %p369 = por %p367, %p368
      %s370 = ssub.s32 %s30, %s37
      %p371 = scmp.eq.s32.totalorder %s370, 0
      %s373 = sadd.s32 %s372, 1
      %s374 = scalar_select %p371, %s372, %s373
      %p377 = pneg %p371
      %p378 = scmp.eq.s32.totalorder %s22, 1
      %p379 = por %p377, %p378
      %p380 = scmp.ne.s32.totalorder %s372, %s375
      %p381 = scmp.eq.s32.totalorder %s22, 0
      %p382 = por %p380, %p381
      %p383 = scmp.ne.s32.totalorder %s372, %s375
      %p384 = scmp.eq.s32.totalorder %s27, 1
      %p385 = por %p383, %p384
      %p386 = scmp.ne.s32.totalorder %s375, %s376
      %p387 = scmp.eq.s32.totalorder %s27, 0
      %p388 = por %p386, %p387
      %p389 = scmp.ne.s32.totalorder %s375, %s376
      %p390 = scmp.eq.s32.totalorder %s28, 1
      %p391 = por %p389, %p390
      %p393 = scmp.ne.s32.totalorder %s376, %s392
      %p394 = scmp.eq.s32.totalorder %s28, 0
      %p395 = por %p393, %p394
      %s396 = ssub.s32 %s30, %s37
      %p397 = scmp.eq.s32.totalorder %s396, 0
      %s399 = sadd.s32 %s398, 1
      %s400 = scalar_select %p397, %s398, %s399
      %p403 = pneg %p397
      %p404 = scmp.eq.s32.totalorder %s22, 1
      %p405 = por %p403, %p404
      %p406 = scmp.ne.s32.totalorder %s398, %s401
      %p407 = scmp.eq.s32.totalorder %s22, 0
      %p408 = por %p406, %p407
      %p409 = scmp.ne.s32.totalorder %s398, %s401
      %p410 = scmp.eq.s32.totalorder %s27, 1
      %p411 = por %p409, %p410
      %p412 = scmp.ne.s32.totalorder %s401, %s402
      %p413 = scmp.eq.s32.totalorder %s27, 0
      %p414 = por %p412, %p413
      %p415 = scmp.ne.s32.totalorder %s401, %s402
      %p416 = scmp.eq.s32.totalorder %s28, 1
      %p417 = por %p415, %p416
      %p419 = scmp.ne.s32.totalorder %s402, %s418
      %p420 = scmp.eq.s32.totalorder %s28, 0
      %p421 = por %p419, %p420
      %s422 = ssub.s32 %s29, %s41
      %p423 = scmp.eq.s32.totalorder %s422, 0
      %s425 = sadd.s32 %s424, 1
      %s426 = scalar_select %p423, %s424, %s425
      %p429 = pneg %p423
      %p430 = scmp.eq.s32.totalorder %s22, 1
      %p431 = por %p429, %p430
      %p432 = scmp.ne.s32.totalorder %s424, %s427
      %p433 = scmp.eq.s32.totalorder %s22, 0
      %p434 = por %p432, %p433
      %p435 = scmp.ne.s32.totalorder %s424, %s427
      %p436 = scmp.eq.s32.totalorder %s27, 1
      %p437 = por %p435, %p436
      %p438 = scmp.ne.s32.totalorder %s427, %s428
      %p439 = scmp.eq.s32.totalorder %s27, 0
      %p440 = por %p438, %p439
      %p441 = scmp.ne.s32.totalorder %s427, %s428
      %p442 = scmp.eq.s32.totalorder %s28, 1
      %p443 = por %p441, %p442
      %p445 = scmp.ne.s32.totalorder %s428, %s444
      %p446 = scmp.eq.s32.totalorder %s28, 0
      %p447 = por %p445, %p446
      %p448 = scmp.le.s32.totalorder 1, %s22
      %p449 = scmp.lt.s32.totalorder %s22, 3
      %p450 = pnand %p448, %p449
      %p451 = pneg %p450
      // Predicated region
      $region9: #{tpu_custom_call.1} parent=5 // pred_check
        _
      $region10: #{tpu_custom_call.1} parent=5 // pred_check_branch
        %453 = sbr.rel (%p450) target = $region12
      $region11: #{tpu_custom_call.1} parent=5 // pred_region
        %s454 = ssub.s32 %s22, 1
        // Predicated region
        $region13: #{tpu_custom_call.1} parent=11 // pred_check
          %p455 = pneg %p60
        $region14: #{tpu_custom_call.1} parent=11 // pred_check_branch
          %457 = sbr.rel (%p455) target = $region16
        $region15: #{tpu_custom_call.1} parent=11 // pred_region
          %s458 = smul.u32 2, %s31
          %p459 = scmp.lt.s32.totalorder %s458, 1
          %s460 = scalar_select %p459, %s458, 1
          %s461 = smul.addr %s460, 8
          %s462 = scalar_lea.vmem %s0, %s461
          %s463 = smul.u32 2, %s31
        $region16: #{tpu_custom_call.1} parent=11 // pred_fallthru
          _
        // Predicated region
        $region17: #{tpu_custom_call.1} parent=11 // pred_check
          %p464 = pneg %p81
        $region18: #{tpu_custom_call.1} parent=11 // pred_check_branch
          %466 = sbr.rel (%p464) target = $region20
        $region19: #{tpu_custom_call.1} parent=11 // pred_region
          _
        $region20: #{tpu_custom_call.1} parent=11 // pred_fallthru
          _
        // Predicated region
        $region21: #{tpu_custom_call.1} parent=11 // pred_check
          %p467 = pneg %p102
        $region22: #{tpu_custom_call.1} parent=11 // pred_check_branch
          %469 = sbr.rel (%p467) target = $region24
        $region23: #{tpu_custom_call.1} parent=11 // pred_region
          _
        $region24: #{tpu_custom_call.1} parent=11 // pred_fallthru
          _
      $region12: #{tpu_custom_call.1} parent=5 // pred_fallthru
        _
      %p470 = scmp.lt.s32.totalorder %s22, 2
      // Predicated region
      $region25: #{tpu_custom_call.1} parent=5 // pred_check
        %p471 = pneg %p470
      $region26: #{tpu_custom_call.1} parent=5 // pred_check_branch
        %473 = sbr.rel (%p471) target = $region28
      $region27: #{tpu_custom_call.1} parent=5 // pred_region
        // Predicated region
        $region29: #{tpu_custom_call.1} parent=27 // pred_check
          %p474 = pneg %p122
        $region30: #{tpu_custom_call.1} parent=27 // pred_check_branch
          %476 = sbr.rel (%p474) target = $region32
        $region31: #{tpu_custom_call.1} parent=27 // pred_region
          %p477 = scmp.lt.s32.totalorder %s30, 1
          %s478 = scalar_select %p477, %s30, 1
          %s479 = scalar_lea.vmem %s3, %s478
        $region32: #{tpu_custom_call.1} parent=27 // pred_fallthru
          _
        // Predicated region
        $region33: #{tpu_custom_call.1} parent=27 // pred_check
          %p480 = pneg %p148
        $region34: #{tpu_custom_call.1} parent=27 // pred_check_branch
          %482 = sbr.rel (%p480) target = $region36
        $region35: #{tpu_custom_call.1} parent=27 // pred_region
          %p483 = scmp.lt.s32.totalorder %s30, 1
          %s484 = scalar_select %p483, %s30, 1
          %s485 = scalar_lea.vmem %s4, %s484
        $region36: #{tpu_custom_call.1} parent=27 // pred_fallthru
          _
        // Predicated region
        $region37: #{tpu_custom_call.1} parent=27 // pred_check
          %p486 = pneg %p174
        $region38: #{tpu_custom_call.1} parent=27 // pred_check_branch
          %488 = sbr.rel (%p486) target = $region40
        $region39: #{tpu_custom_call.1} parent=27 // pred_region
          %p489 = scmp.lt.s32.totalorder %s30, 1
          %s490 = scalar_select %p489, %s30, 1
          %s491 = smul.addr %s490, 4
          %s492 = smul.addr %s491, 4
          %s493 = scalar_lea.vmem %s5, %s492
        $region40: #{tpu_custom_call.1} parent=27 // pred_fallthru
          _
        // Predicated region
        $region41: #{tpu_custom_call.1} parent=27 // pred_check
          %p494 = pneg %p200
        $region42: #{tpu_custom_call.1} parent=27 // pred_check_branch
          %496 = sbr.rel (%p494) target = $region44
        $region43: #{tpu_custom_call.1} parent=27 // pred_region
          %p497 = scmp.lt.s32.totalorder %s30, 1
          %s498 = scalar_select %p497, %s30, 1
          %s499 = scalar_lea.vmem %s6, %s498
        $region44: #{tpu_custom_call.1} parent=27 // pred_fallthru
          _
        // Predicated region
        $region45: #{tpu_custom_call.1} parent=27 // pred_check
          %p500 = pneg %p226
        $region46: #{tpu_custom_call.1} parent=27 // pred_check_branch
          %502 = sbr.rel (%p500) target = $region48
        $region47: #{tpu_custom_call.1} parent=27 // pred_region
          %p503 = scmp.lt.s32.totalorder %s30, 1
          %s504 = scalar_select %p503, %s30, 1
          %s505 = smul.addr %s504, 4
          %s506 = smul.addr %s505, 4
          %s507 = scalar_lea.vmem %s7, %s506
        $region48: #{tpu_custom_call.1} parent=27 // pred_fallthru
          _
        // Predicated region
        $region49: #{tpu_custom_call.1} parent=27 // pred_check
          %p508 = pneg %p252
        $region50: #{tpu_custom_call.1} parent=27 // pred_check_branch
          %510 = sbr.rel (%p508) target = $region52
        $region51: #{tpu_custom_call.1} parent=27 // pred_region
          %p511 = scmp.lt.s32.totalorder %s30, 1
          %s512 = scalar_select %p511, %s30, 1
          %s513 = scalar_lea.vmem %s8, %s512
        $region52: #{tpu_custom_call.1} parent=27 // pred_fallthru
          _
        // Predicated region
        $region53: #{tpu_custom_call.1} parent=27 // pred_check
          %p514 = pneg %p278
        $region54: #{tpu_custom_call.1} parent=27 // pred_check_branch
          %516 = sbr.rel (%p514) target = $region56
        $region55: #{tpu_custom_call.1} parent=27 // pred_region
          %p517 = scmp.lt.s32.totalorder %s30, 1
          %s518 = scalar_select %p517, %s30, 1
          %s519 = scalar_lea.vmem %s9, %s518
        $region56: #{tpu_custom_call.1} parent=27 // pred_fallthru
          _
        // Predicated region
        $region57: #{tpu_custom_call.1} parent=27 // pred_check
          %p520 = pneg %p304
        $region58: #{tpu_custom_call.1} parent=27 // pred_check_branch
          %522 = sbr.rel (%p520) target = $region60
        $region59: #{tpu_custom_call.1} parent=27 // pred_region
          %p523 = scmp.lt.s32.totalorder %s30, 1
          %s524 = scalar_select %p523, %s30, 1
          %s525 = scalar_lea.vmem %s10, %s524
        $region60: #{tpu_custom_call.1} parent=27 // pred_fallthru
          _
        // Predicated region
        $region61: #{tpu_custom_call.1} parent=27 // pred_check
          %p526 = pneg %p330
        $region62: #{tpu_custom_call.1} parent=27 // pred_check_branch
          %528 = sbr.rel (%p526) target = $region64
        $region63: #{tpu_custom_call.1} parent=27 // pred_region
          %p529 = scmp.lt.s32.totalorder %s30, 1
          %s530 = scalar_select %p529, %s30, 1
          %s531 = smul.addr %s530, 4
          %s532 = smul.addr %s531, 4
          %s533 = scalar_lea.vmem %s11, %s532
        $region64: #{tpu_custom_call.1} parent=27 // pred_fallthru
          _
        // Predicated region
        $region65: #{tpu_custom_call.1} parent=27 // pred_check
          %p534 = pneg %p356
        $region66: #{tpu_custom_call.1} parent=27 // pred_check_branch
          %536 = sbr.rel (%p534) target = $region68
        $region67: #{tpu_custom_call.1} parent=27 // pred_region
          %p537 = scmp.lt.s32.totalorder %s30, 1
          %s538 = scalar_select %p537, %s30, 1
          %s539 = scalar_lea.vmem %s12, %s538
        $region68: #{tpu_custom_call.1} parent=27 // pred_fallthru
          _
        // Predicated region
        $region69: #{tpu_custom_call.1} parent=27 // pred_check
          %p540 = pneg %p382
        $region70: #{tpu_custom_call.1} parent=27 // pred_check_branch
          %542 = sbr.rel (%p540) target = $region72
        $region71: #{tpu_custom_call.1} parent=27 // pred_region
          %p543 = scmp.lt.s32.totalorder %s30, 1
          %s544 = scalar_select %p543, %s30, 1
          %s545 = smul.addr %s544, 16
          %s546 = smul.addr %s545, 4
          %s547 = scalar_lea.vmem %s13, %s546
        $region72: #{tpu_custom_call.1} parent=27 // pred_fallthru
          _
        // Predicated region
        $region73: #{tpu_custom_call.1} parent=27 // pred_check
          %p548 = pneg %p408
        $region74: #{tpu_custom_call.1} parent=27 // pred_check_branch
          %550 = sbr.rel (%p548) target = $region76
        $region75: #{tpu_custom_call.1} parent=27 // pred_region
          %p551 = scmp.lt.s32.totalorder %s30, 1
          %s552 = scalar_select %p551, %s30, 1
          %s553 = scalar_lea.vmem %s14, %s552
        $region76: #{tpu_custom_call.1} parent=27 // pred_fallthru
          _
      $region28: #{tpu_custom_call.1} parent=5 // pred_fallthru
        _
      %p554 = scmp.le.s32.totalorder 1, %s22
      %p555 = scmp.lt.s32.totalorder %s22, 3
      %p556 = pnand %p554, %p555
      %p557 = pneg %p556
      // Predicated region
      $region77: #{tpu_custom_call.1} parent=5 // pred_check
        _
      $region78: #{tpu_custom_call.1} parent=5 // pred_check_branch
        %559 = sbr.rel (%p556) target = $region80
      $region79: #{tpu_custom_call.1} parent=5 // pred_region
        %s560 = ssub.s32 %s22, 1
        %s561 = smul.u32 2, %s31
        %p562 = scmp.lt.s32.totalorder %s561, 1
        %s563 = scalar_select %p562, %s561, 1
        %s564 = smul.addr %s563, 8
        %s565 = scalar_lea.vmem %s0, %s564
        %p566 = pneg %p60
        %p567 = pneg %p57
        %p568 = pneg %p81
        %p569 = pneg %p78
        %p570 = pneg %p102
        %p571 = pneg %p99
        %p572 = scmp.lt.s32.totalorder %s32, 1
        %s573 = scalar_select %p572, %s32, 1
        %s574 = scalar_lea.vmem %s3, %s573
        %p575 = pneg %p128
        %p576 = pneg %p125
        %p577 = scmp.lt.s32.totalorder %s32, 1
        %s578 = scalar_select %p577, %s32, 1
        %s579 = scalar_lea.vmem %s4, %s578
        %p580 = pneg %p154
        %p581 = pneg %p151
        %p582 = scmp.lt.s32.totalorder %s32, 1
        %s583 = scalar_select %p582, %s32, 1
        %s584 = smul.addr %s583, 4
        %s585 = smul.addr %s584, 4
        %s586 = scalar_lea.vmem %s5, %s585
        %p587 = pneg %p180
        %p588 = pneg %p177
        %p589 = scmp.lt.s32.totalorder %s32, 1
        %s590 = scalar_select %p589, %s32, 1
        %s591 = scalar_lea.vmem %s6, %s590
        %p592 = pneg %p206
        %p593 = pneg %p203
        %p594 = scmp.lt.s32.totalorder %s32, 1
        %s595 = scalar_select %p594, %s32, 1
        %s596 = smul.addr %s595, 4
        %s597 = smul.addr %s596, 4
        %s598 = scalar_lea.vmem %s7, %s597
        %p599 = pneg %p232
        %p600 = pneg %p229
        %p601 = scmp.lt.s32.totalorder %s32, 1
        %s602 = scalar_select %p601, %s32, 1
        %s603 = scalar_lea.vmem %s8, %s602
        %p604 = pneg %p258
        %p605 = pneg %p255
        %p606 = scmp.lt.s32.totalorder %s32, 1
        %s607 = scalar_select %p606, %s32, 1
        %s608 = scalar_lea.vmem %s9, %s607
        %p609 = pneg %p284
        %p610 = pneg %p281
        %p611 = scmp.lt.s32.totalorder %s32, 1
        %s612 = scalar_select %p611, %s32, 1
        %s613 = scalar_lea.vmem %s10, %s612
        %p614 = pneg %p310
        %p615 = pneg %p307
        %p616 = scmp.lt.s32.totalorder %s32, 1
        %s617 = scalar_select %p616, %s32, 1
        %s618 = smul.addr %s617, 4
        %s619 = smul.addr %s618, 4
        %s620 = scalar_lea.vmem %s11, %s619
        %p621 = pneg %p336
        %p622 = pneg %p333
        %p623 = scmp.lt.s32.totalorder %s32, 1
        %s624 = scalar_select %p623, %s32, 1
        %s625 = scalar_lea.vmem %s12, %s624
        %p626 = pneg %p362
        %p627 = pneg %p359
        %p628 = scmp.lt.s32.totalorder %s32, 1
        %s629 = scalar_select %p628, %s32, 1
        %s630 = smul.addr %s629, 16
        %s631 = smul.addr %s630, 4
        %s632 = scalar_lea.vmem %s13, %s631
        %p633 = pneg %p388
        %p634 = pneg %p385
        %p635 = scmp.lt.s32.totalorder %s32, 1
        %s636 = scalar_select %p635, %s32, 1
        %s637 = scalar_lea.vmem %s14, %s636
        %p638 = pneg %p414
        %p639 = pneg %p411
        %p640 = pneg %p440
        %p641 = pneg %p437
        %s642 = smul.u32 2, %s31
        %p643 = scmp.lt.s32.totalorder %s642, 1
        %s644 = scalar_select %p643, %s642, 1
        %s645 = smul.addr %s644, 8
        %s646 = scalar_lea.vmem %s0, %s645
        %s647 = smul.u32 2, %s31
        %p648 = scmp.lt.s32.totalorder %s32, 1
        %s649 = scalar_select %p648, %s32, 1
        %s650 = scalar_lea.vmem %s3, %s649
        %p651 = scmp.lt.s32.totalorder %s32, 1
        %s652 = scalar_select %p651, %s32, 1
        %s653 = scalar_lea.vmem %s4, %s652
        %p654 = scmp.lt.s32.totalorder %s32, 1
        %s655 = scalar_select %p654, %s32, 1
        %s656 = smul.addr %s655, 4
        %s657 = smul.addr %s656, 4
        %s658 = scalar_lea.vmem %s5, %s657
        %p659 = scmp.lt.s32.totalorder %s32, 1
        %s660 = scalar_select %p659, %s32, 1
        %s661 = scalar_lea.vmem %s6, %s660
        %p662 = scmp.lt.s32.totalorder %s32, 1
        %s663 = scalar_select %p662, %s32, 1
        %s664 = smul.addr %s663, 4
        %s665 = smul.addr %s664, 4
        %s666 = scalar_lea.vmem %s7, %s665
        %p667 = scmp.lt.s32.totalorder %s32, 1
        %s668 = scalar_select %p667, %s32, 1
        %s669 = scalar_lea.vmem %s8, %s668
        %p670 = scmp.lt.s32.totalorder %s32, 1
        %s671 = scalar_select %p670, %s32, 1
        %s672 = scalar_lea.vmem %s9, %s671
        %p673 = scmp.lt.s32.totalorder %s32, 1
        %s674 = scalar_select %p673, %s32, 1
        %s675 = scalar_lea.vmem %s10, %s674
        %p676 = scmp.lt.s32.totalorder %s32, 1
        %s677 = scalar_select %p676, %s32, 1
        %s678 = smul.addr %s677, 4
        %s679 = smul.addr %s678, 4
        %s680 = scalar_lea.vmem %s11, %s679
        %p681 = scmp.lt.s32.totalorder %s32, 1
        %s682 = scalar_select %p681, %s32, 1
        %s683 = scalar_lea.vmem %s12, %s682
        %p684 = scmp.lt.s32.totalorder %s32, 1
        %s685 = scalar_select %p684, %s32, 1
        %s686 = smul.addr %s685, 16
        %s687 = smul.addr %s686, 4
        %s688 = scalar_lea.vmem %s13, %s687
        %p689 = scmp.lt.s32.totalorder %s32, 1
        %s690 = scalar_select %p689, %s32, 1
        %s691 = scalar_lea.vmem %s14, %s690
        %s692 = smul.u32 2, %s31
        %p694 = scmp.eq.s32.totalorder %s32, 0
        // Predicated region
        $region81: #{tpu_custom_call.1} parent=79 // pred_check
          %p695 = pneg %p694
        $region82: #{tpu_custom_call.1} parent=79 // pred_check_branch
          %697 = sbr.rel (%p695) target = $region84
        $region83: #{tpu_custom_call.1} parent=79 // pred_region
          %v698 = vld [vmem:[%s646] sm:$0xff]
          %v699 = vld [vmem:[%s646 + $0x8] sm:$0xff]
          %v700 = vld [vmem:[%s1] sm:$0xff]
          %v701 = vld [vmem:[%s1 + $0x8] sm:$0xff]
          %v702 = vadd.f32 %v698, %v700
          %v703 = vadd.f32 %v699, %v701
          %vm704 = vcmask 261120
          %705 = vst.msk [vmem:[#allocation2] sm:$0xff] %vm704, %v702
          %706 = vst.msk [vmem:[#allocation2 + $0x8] sm:$0xff] %vm704, %v703
        $region84: #{tpu_custom_call.1} parent=79 // pred_fallthru
          _
        %v707 = vld [vmem:[#allocation2] sm:$0xff]
        %v708 = vld [vmem:[#allocation2 + $0x8] sm:$0xff]
        %v709 = vld [vmem:[%s650] sm:$0x1]
        %v710 = vld [vmem:[%s653] sm:$0x1]
        %vm711 = vcmask 261120
        %v712 = vsel %vm711, %v707, 0.0
        %713 = vadd.xlane.f32.xlu0 %v712
        %v714 = vpop.xlane.xlu0 %713
        %v715 = vsel %vm711, %v708, 0.0
        %716 = vadd.xlane.f32.xlu0 %v715
        %v717 = vpop.xlane.xlu0 %716
        %v718 = vrcp.pop 32.0
        %v719 = vmul.f32 %v714, %v718
        %v720 = vmul.f32 %v717, %v718
        %v721 = vsub.f32 %v707, %v719
        %v722 = vsub.f32 %v708, %v720
        %v723 = vmul.f32 %v721, %v721
        %v724 = vmul.f32 %v722, %v722
        %v725 = vsel %vm711, %v723, 0.0
        %726 = vadd.xlane.f32.xlu0 %v725
        %v727 = vpop.xlane.xlu0 %726
        %v728 = vsel %vm711, %v724, 0.0
        %729 = vadd.xlane.f32.xlu0 %v728
        %v730 = vpop.xlane.xlu0 %729
        %v731 = vmul.f32 %v727, %v718
        %v732 = vmul.f32 %v730, %v718
        %v733 = vadd.f32 %v731, 1e-05
        %v734 = vadd.f32 %v732, 1e-05
        %v735 = vrsqrt.pop %v733
        %v736 = vrsqrt.pop %v734
        %v737 = vmul.f32 %v721, %v735
        %v738 = vmul.f32 %v722, %v736
        %v740 = vlaneseq
        %v741 = vshrl.u32 %v740, 7
        %v742 = vsub.s32 0, %v741
        %v743 = vrot.slane %v709, %v742
        %v745 = vmul.f32 %v737, %v743
        %v746 = vmul.f32 %v738, %v743
        %v748 = vlaneseq
        %v749 = vshrl.u32 %v748, 7
        %v750 = vsub.s32 0, %v749
        %v751 = vrot.slane %v710, %v750
        %v753 = vadd.f32 %v745, %v751
        %v754 = vadd.f32 %v746, %v751
        %v755 = vpack.c.bf16 %v754, %v753
        %v756 = vld [vmem:[%s658] sm:$0xf]
        %v757 = vld [vmem:[%s658 + $0x4] sm:$0xf]
        %v758 = vld [vmem:[%s658 + $0x8] sm:$0xf]
        %v759 = vld [vmem:[%s658 + $0xc] sm:$0xf]
        %v760 = vld [vmem:[%s661] sm:$0x1]
        %v762 = vlaneseq
        %v763 = vshrl.u32 %v762, 7
        %v764 = vsub.s32 0, %v763
        %v765 = vrot.slane %v760, %v764
        %v771 = vunpack.c.l.b16 %v756
        %v772 = vunpack.c.l.b16 %v757
        %v773 = vunpack.c.l.b16 %v758
        %v774 = vunpack.c.l.b16 %v759
        %v775 = vpack.c.b16 %v772, %v771
        %v776 = vpack.c.b16 %v774, %v773
        %v780 = vsel %vm711, %v755, 0
        %782 = vmatprep.subr.bf16.mxu0 0
        %783 = vmatpush1.bf16.msra.mxu0 %v775
        %784 = vmatprep.subr.bf16.mxu0 0
        %785 = vmatpush1.bf16.msra.mxu0 %v776
        %786 = vmatprep.subr.bf16.mxu0 0
        %787 = vmatpush1.bf16.msra.mxu0 0
        %788 = vmatprep.subr.bf16.mxu0 0
        %789 = vmatpush1.bf16.msra.mxu0 0
        %790 = vmatprep.subr.bf16.mxu0 0
        %791 = vmatpush1.bf16.msra.mxu0 0
        %792 = vmatprep.subr.bf16.mxu0 0
        %793 = vmatpush1.bf16.msra.mxu0 0
        %794 = vmatprep.subr.bf16.mxu0 0
        %795 = vmatpush1.bf16.msra.mxu0 0
        %796 = vmatprep.subr.bf16.mxu0 0
        %797 = vmatpush1.bf16.msra.mxu0 0
        %798 = vmatprep.subr.bf16.mxu0 0
        %799 = vmatpush1.bf16.msra.mxu0 0
        %800 = vmatprep.subr.bf16.mxu0 0
        %801 = vmatpush1.bf16.msra.mxu0 0
        %802 = vmatprep.subr.bf16.mxu0 0
        %803 = vmatpush1.bf16.msra.mxu0 0
        %804 = vmatprep.subr.bf16.mxu0 0
        %805 = vmatpush1.bf16.msra.mxu0 0
        %806 = vmatprep.subr.bf16.mxu0 0
        %807 = vmatpush1.bf16.msra.mxu0 0
        %808 = vmatprep.subr.bf16.mxu0 0
        %809 = vmatpush1.bf16.msra.mxu0 0
        %810 = vmatprep.subr.bf16.mxu0 0
        %811 = vmatpush1.bf16.msra.mxu0 0
        %812 = vmatprep.subr.bf16.mxu0 0
        %813 = vmatpush1.bf16.msra.mxu0 0
        %814 = vmatprep.mubr.bf16.mxu0 0
        %815 = vmatmul.mubr.bf16.gmra.mrb[0].mxu0 %v780
        %v816 = vpop.f32.mrb[0].mxu0
        %v817 = vadd.f32 %v765, %v816
        %v818 = vpop.f32.mrb[0].mxu0
        %v819 = vpop.f32.mrb[0].mxu0
        %v820 = vadd.f32 %v765, %v819
        %v821 = vpop.f32.mrb[0].mxu0
        %822 = vdwg.mxu0
        %v823 = vld [vmem:[%s2] sm:$0xff]
        %v824 = vmul.f32 %v817, 0.35355338
        %v825 = vmul.f32 %v820, 0.35355338
        %v826 = vpack.c.bf16 %v824, %v824
        %v827 = vpack.c.bf16 %v825, %v825
        %v828 = vpack.c.bf16 %v817, %v817
        %v829 = vpack.c.bf16 %v820, %v820
        %831 = vrot.lane.b32.xlu0 %v828, 96
        %v832 = vpop.permute.xlu0 %831
        %vm833 = vcmask 64512
        %v835 = vsel %vm833, %v826, 0
        %v838 = vsel %vm833, %v832, 0
        %840 = vmatprep.subr.bf16.mxu0 0
        %841 = vmatpush1.bf16.xpose.msra.mxu0 %v838
        %842 = vmatprep.subr.bf16.mxu0 0
        %843 = vmatpush1.bf16.xpose.msra.mxu0 0
        %844 = vmatprep.subr.bf16.mxu0 0
        %845 = vmatpush1.bf16.xpose.msra.mxu0 0
        %846 = vmatprep.subr.bf16.mxu0 0
        %847 = vmatpush1.bf16.xpose.msra.mxu0 0
        %848 = vmatprep.subr.bf16.mxu0 0
        %849 = vmatpush1.bf16.xpose.msra.mxu0 0
        %850 = vmatprep.subr.bf16.mxu0 0
        %851 = vmatpush1.bf16.xpose.msra.mxu0 0
        %852 = vmatprep.subr.bf16.mxu0 0
        %853 = vmatpush1.bf16.xpose.msra.mxu0 0
        %854 = vmatprep.subr.bf16.mxu0 0
        %855 = vmatpush1.bf16.xpose.msra.mxu0 0
        %856 = vmatprep.subr.bf16.mxu0 0
        %857 = vmatpush1.bf16.xpose.msra.mxu0 0
        %858 = vmatprep.subr.bf16.mxu0 0
        %859 = vmatpush1.bf16.xpose.msra.mxu0 0
        %860 = vmatprep.subr.bf16.mxu0 0
        %861 = vmatpush1.bf16.xpose.msra.mxu0 0
        %862 = vmatprep.subr.bf16.mxu0 0
        %863 = vmatpush1.bf16.xpose.msra.mxu0 0
        %864 = vmatprep.subr.bf16.mxu0 0
        %865 = vmatpush1.bf16.xpose.msra.mxu0 0
        %866 = vmatprep.subr.bf16.mxu0 0
        %867 = vmatpush1.bf16.xpose.msra.mxu0 0
        %868 = vmatprep.subr.bf16.mxu0 0
        %869 = vmatpush1.bf16.xpose.msra.mxu0 0
        %870 = vmatprep.subr.bf16.mxu0 0
        %871 = vmatpush1.bf16.xpose.msra.mxu0 0
        %872 = vmatprep.mubr.bf16.mxu0 0
        %873 = vmatmul.mubr.bf16.gmra.mrb[0].mxu0 %v835
        %v874 = vpop.f32.mrb[0].mxu0
        %v875 = vadd.f32 %v823, %v874
        %v876 = vpop.f32.mrb[0].mxu0
        %v877 = vpop.f32.mrb[0].mxu0
        %v878 = vpop.f32.mrb[0].mxu0
        %879 = vdwg.mxu0
        %881 = vrot.lane.b32.xlu0 %v829, 96
        %v882 = vpop.permute.xlu0 %881
        %v884 = vsel %vm833, %v827, 0
        %v887 = vsel %vm833, %v882, 0
        %889 = vmatprep.subr.bf16.mxu0 0
        %890 = vmatpush1.bf16.xpose.msra.mxu0 %v887
        %891 = vmatprep.subr.bf16.mxu0 0
        %892 = vmatpush1.bf16.xpose.msra.mxu0 0
        %893 = vmatprep.subr.bf16.mxu0 0
        %894 = vmatpush1.bf16.xpose.msra.mxu0 0
        %895 = vmatprep.subr.bf16.mxu0 0
        %896 = vmatpush1.bf16.xpose.msra.mxu0 0
        %897 = vmatprep.subr.bf16.mxu0 0
        %898 = vmatpush1.bf16.xpose.msra.mxu0 0
        %899 = vmatprep.subr.bf16.mxu0 0
        %900 = vmatpush1.bf16.xpose.msra.mxu0 0
        %901 = vmatprep.subr.bf16.mxu0 0
        %902 = vmatpush1.bf16.xpose.msra.mxu0 0
        %903 = vmatprep.subr.bf16.mxu0 0
        %904 = vmatpush1.bf16.xpose.msra.mxu0 0
        %905 = vmatprep.subr.bf16.mxu0 0
        %906 = vmatpush1.bf16.xpose.msra.mxu0 0
        %907 = vmatprep.subr.bf16.mxu0 0
        %908 = vmatpush1.bf16.xpose.msra.mxu0 0
        %909 = vmatprep.subr.bf16.mxu0 0
        %910 = vmatpush1.bf16.xpose.msra.mxu0 0
        %911 = vmatprep.subr.bf16.mxu0 0
        %912 = vmatpush1.bf16.xpose.msra.mxu0 0
        %913 = vmatprep.subr.bf16.mxu0 0
        %914 = vmatpush1.bf16.xpose.msra.mxu0 0
        %915 = vmatprep.subr.bf16.mxu0 0
        %916 = vmatpush1.bf16.xpose.msra.mxu0 0
        %917 = vmatprep.subr.bf16.mxu0 0
        %918 = vmatpush1.bf16.xpose.msra.mxu0 0
        %919 = vmatprep.subr.bf16.mxu0 0
        %920 = vmatpush1.bf16.xpose.msra.mxu0 0
        %921 = vmatprep.mubr.bf16.mxu0 0
        %922 = vmatmul.mubr.bf16.gmra.mrb[0].mxu0 %v884
        %v923 = vpop.f32.mrb[0].mxu0
        %v924 = vadd.f32 %v823, %v923
        %v925 = vpop.f32.mrb[0].mxu0
        %v926 = vpop.f32.mrb[0].mxu0
        %v927 = vpop.f32.mrb[0].mxu0
        %928 = vdwg.mxu0
        %v929 = vsel %vm833, %v875, -inf
        %930 = vmax.xlane.f32.xlu0 %v929
        %v931 = vpop.xlane.xlu0 %930
        %v932 = vsel %vm833, %v924, -inf
        %933 = vmax.xlane.f32.xlu0 %v932
        %v934 = vpop.xlane.xlu0 %933
        %v935 = vsub.f32 %v875, %v931
        %v936 = vsub.f32 %v924, %v934
        %v937 = vmul.f32 %v935, 1.442695
        %v938 = vpow.pop %v937
        %v939 = vmul.f32 %v936, 1.442695
        %v940 = vpow.pop %v939
        %v941 = vsel %vm833, %v938, 0.0
        %942 = vadd.xlane.f32.xlu0 %v941
        %v943 = vpop.xlane.xlu0 %942
        %v944 = vsel %vm833, %v940, 0.0
        %945 = vadd.xlane.f32.xlu0 %v944
        %v946 = vpop.xlane.xlu0 %945
        %v947 = vrcp.pop %v943
        %v948 = vrcp.pop %v946
        %v949 = vmul.f32 %v938, %v947
        %v950 = vmul.f32 %v940, %v948
        %v951 = vpack.c.bf16 %v949, %v949
        %v952 = vpack.c.bf16 %v950, %v950
        %953 = vrot.lane.b32.xlu0 %v828, 64
        %v954 = vpop.permute.xlu0 %953
        %v956 = vsel %vm833, %v951, 0
        %vm958 = vcmask 1043456
        %v960 = vsel %vm958, %v954, 0
        %962 = vmatprep.subr.bf16.mxu0 0
        %963 = vmatpush1.bf16.msra.mxu0 %v960
        %964 = vmatprep.subr.bf16.mxu0 0
        %965 = vmatpush1.bf16.msra.mxu0 0
        %966 = vmatprep.subr.bf16.mxu0 0
        %967 = vmatpush1.bf16.msra.mxu0 0
        %968 = vmatprep.subr.bf16.mxu0 0
        %969 = vmatpush1.bf16.msra.mxu0 0
        %970 = vmatprep.subr.bf16.mxu0 0
        %971 = vmatpush1.bf16.msra.mxu0 0
        %972 = vmatprep.subr.bf16.mxu0 0
        %973 = vmatpush1.bf16.msra.mxu0 0
        %974 = vmatprep.subr.bf16.mxu0 0
        %975 = vmatpush1.bf16.msra.mxu0 0
        %976 = vmatprep.subr.bf16.mxu0 0
        %977 = vmatpush1.bf16.msra.mxu0 0
        %978 = vmatprep.subr.bf16.mxu0 0
        %979 = vmatpush1.bf16.msra.mxu0 0
        %980 = vmatprep.subr.bf16.mxu0 0
        %981 = vmatpush1.bf16.msra.mxu0 0
        %982 = vmatprep.subr.bf16.mxu0 0
        %983 = vmatpush1.bf16.msra.mxu0 0
        %984 = vmatprep.subr.bf16.mxu0 0
        %985 = vmatpush1.bf16.msra.mxu0 0
        %986 = vmatprep.subr.bf16.mxu0 0
        %987 = vmatpush1.bf16.msra.mxu0 0
        %988 = vmatprep.subr.bf16.mxu0 0
        %989 = vmatpush1.bf16.msra.mxu0 0
        %990 = vmatprep.subr.bf16.mxu0 0
        %991 = vmatpush1.bf16.msra.mxu0 0
        %992 = vmatprep.subr.bf16.mxu0 0
        %993 = vmatpush1.bf16.msra.mxu0 0
        %994 = vmatprep.mubr.bf16.mxu0 0
        %995 = vmatmul.mubr.bf16.gmra.mrb[0].mxu0 %v956
        %v996 = vpop.f32.mrb[0].mxu0
        %v997 = vadd.f32 0.0, %v996
        %v998 = vpop.f32.mrb[0].mxu0
        %v999 = vpop.f32.mrb[0].mxu0
        %v1000 = vpop.f32.mrb[0].mxu0
        %1001 = vdwg.mxu0
        %1002 = vrot.lane.b32.xlu0 %v829, 64
        %v1003 = vpop.permute.xlu0 %1002
        %v1005 = vsel %vm833, %v952, 0
        %v1008 = vsel %vm958, %v1003, 0
        %1010 = vmatprep.subr.bf16.mxu0 0
        %1011 = vmatpush1.bf16.msra.mxu0 %v1008
        %1012 = vmatprep.subr.bf16.mxu0 0
        %1013 = vmatpush1.bf16.msra.mxu0 0
        %1014 = vmatprep.subr.bf16.mxu0 0
        %1015 = vmatpush1.bf16.msra.mxu0 0
        %1016 = vmatprep.subr.bf16.mxu0 0
        %1017 = vmatpush1.bf16.msra.mxu0 0
        %1018 = vmatprep.subr.bf16.mxu0 0
        %1019 = vmatpush1.bf16.msra.mxu0 0
        %1020 = vmatprep.subr.bf16.mxu0 0
        %1021 = vmatpush1.bf16.msra.mxu0 0
        %1022 = vmatprep.subr.bf16.mxu0 0
        %1023 = vmatpush1.bf16.msra.mxu0 0
        %1024 = vmatprep.subr.bf16.mxu0 0
        %1025 = vmatpush1.bf16.msra.mxu0 0
        %1026 = vmatprep.subr.bf16.mxu0 0
        %1027 = vmatpush1.bf16.msra.mxu0 0
        %1028 = vmatprep.subr.bf16.mxu0 0
        %1029 = vmatpush1.bf16.msra.mxu0 0
        %1030 = vmatprep.subr.bf16.mxu0 0
        %1031 = vmatpush1.bf16.msra.mxu0 0
        %1032 = vmatprep.subr.bf16.mxu0 0
        %1033 = vmatpush1.bf16.msra.mxu0 0
        %1034 = vmatprep.subr.bf16.mxu0 0
        %1035 = vmatpush1.bf16.msra.mxu0 0
        %1036 = vmatprep.subr.bf16.mxu0 0
        %1037 = vmatpush1.bf16.msra.mxu0 0
        %1038 = vmatprep.subr.bf16.mxu0 0
        %1039 = vmatpush1.bf16.msra.mxu0 0
        %1040 = vmatprep.subr.bf16.mxu0 0
        %1041 = vmatpush1.bf16.msra.mxu0 0
        %1042 = vmatprep.mubr.bf16.mxu0 0
        %1043 = vmatmul.mubr.bf16.gmra.mrb[0].mxu0 %v1005
        %v1044 = vpop.f32.mrb[0].mxu0
        %v1045 = vadd.f32 0.0, %v1044
        %v1046 = vpop.f32.mrb[0].mxu0
        %v1047 = vpop.f32.mrb[0].mxu0
        %v1048 = vpop.f32.mrb[0].mxu0
        %1049 = vdwg.mxu0
        %1050 = vst.msk [vmem:[#allocation3] sm:$0xff] %vm833, %v997
        %1051 = vst.msk [vmem:[#allocation3 + $0x8] sm:$0xff] %vm833, %v1045
        %1053 = vrot.lane.b32.xlu0 %v826, 120
        %v1054 = vpop.permute.xlu0 %1053
        %1055 = vrot.lane.b32.xlu0 %v828, 88
        %v1056 = vpop.permute.xlu0 %1055
        %v1058 = vsel %vm833, %v1054, 0
        %v1061 = vsel %vm833, %v1056, 0
        %1063 = vmatprep.subr.bf16.mxu0 0
        %1064 = vmatpush1.bf16.xpose.msra.mxu0 %v1061
        %1065 = vmatprep.subr.bf16.mxu0 0
        %1066 = vmatpush1.bf16.xpose.msra.mxu0 0
        %1067 = vmatprep.subr.bf16.mxu0 0
        %1068 = vmatpush1.bf16.xpose.msra.mxu0 0
        %1069 = vmatprep.subr.bf16.mxu0 0
        %1070 = vmatpush1.bf16.xpose.msra.mxu0 0
        %1071 = vmatprep.subr.bf16.mxu0 0
        %1072 = vmatpush1.bf16.xpose.msra.mxu0 0
        %1073 = vmatprep.subr.bf16.mxu0 0
        %1074 = vmatpush1.bf16.xpose.msra.mxu0 0
        %1075 = vmatprep.subr.bf16.mxu0 0
        %1076 = vmatpush1.bf16.xpose.msra.mxu0 0
        %1077 = vmatprep.subr.bf16.mxu0 0
        %1078 = vmatpush1.bf16.xpose.msra.mxu0 0
        %1079 = vmatprep.subr.bf16.mxu0 0
        %1080 = vmatpush1.bf16.xpose.msra.mxu0 0
        %1081 = vmatprep.subr.bf16.mxu0 0
        %1082 = vmatpush1.bf16.xpose.msra.mxu0 0
        %1083 = vmatprep.subr.bf16.mxu0 0
        %1084 = vmatpush1.bf16.xpose.msra.mxu0 0
        %1085 = vmatprep.subr.bf16.mxu0 0
        %1086 = vmatpush1.bf16.xpose.msra.mxu0 0
        %1087 = vmatprep.subr.bf16.mxu0 0
        %1088 = vmatpush1.bf16.xpose.msra.mxu0 0
        %1089 = vmatprep.subr.bf16.mxu0 0
        %1090 = vmatpush1.bf16.xpose.msra.mxu0 0
        %1091 = vmatprep.subr.bf16.mxu0 0
        %1092 = vmatpush1.bf16.xpose.msra.mxu0 0
        %1093 = vmatprep.subr.bf16.mxu0 0
        %1094 = vmatpush1.bf16.xpose.msra.mxu0 0
        %1095 = vmatprep.mubr.bf16.mxu0 0
        %1096 = vmatmul.mubr.bf16.gmra.mrb[0].mxu0 %v1058
        %v1097 = vpop.f32.mrb[0].mxu0
        %v1098 = vadd.f32 %v823, %v1097
        %v1099 = vpop.f32.mrb[0].mxu0
        %v1100 = vpop.f32.mrb[0].mxu0
        %v1101 = vpop.f32.mrb[0].mxu0
        %1102 = vdwg.mxu0
        %1104 = vrot.lane.b32.xlu0 %v827, 120
        %v1105 = vpop.permute.xlu0 %1104
        %1106 = vrot.lane.b32.xlu0 %v829, 88
        %v1107 = vpop.permute.xlu0 %1106
        %v1109 = vsel %vm833, %v1105, 0
        %v1112 = vsel %vm833, %v1107, 0
        %1114 = vmatprep.subr.bf16.mxu0 0
        %1115 = vmatpush1.bf16.xpose.msra.mxu0 %v1112
        %1116 = vmatprep.subr.bf16.mxu0 0
        %1117 = vmatpush1.bf16.xpose.msra.mxu0 0
        %1118 = vmatprep.subr.bf16.mxu0 0
        %1119 = vmatpush1.bf16.xpose.msra.mxu0 0
        %1120 = vmatprep.subr.bf16.mxu0 0
        %1121 = vmatpush1.bf16.xpose.msra.mxu0 0
        %1122 = vmatprep.subr.bf16.mxu0 0
        %1123 = vmatpush1.bf16.xpose.msra.mxu0 0
        %1124 = vmatprep.subr.bf16.mxu0 0
        %1125 = vmatpush1.bf16.xpose.msra.mxu0 0
        %1126 = vmatprep.subr.bf16.mxu0 0
        %1127 = vmatpush1.bf16.xpose.msra.mxu0 0
        %1128 = vmatprep.subr.bf16.mxu0 0
        %1129 = vmatpush1.bf16.xpose.msra.mxu0 0
        %1130 = vmatprep.subr.bf16.mxu0 0
        %1131 = vmatpush1.bf16.xpose.msra.mxu0 0
        %1132 = vmatprep.subr.bf16.mxu0 0
        %1133 = vmatpush1.bf16.xpose.msra.mxu0 0
        %1134 = vmatprep.subr.bf16.mxu0 0
        %1135 = vmatpush1.bf16.xpose.msra.mxu0 0
        %1136 = vmatprep.subr.bf16.mxu0 0
        %1137 = vmatpush1.bf16.xpose.msra.mxu0 0
        %1138 = vmatprep.subr.bf16.mxu0 0
        %1139 = vmatpush1.bf16.xpose.msra.mxu0 0
        %1140 = vmatprep.subr.bf16.mxu0 0
        %1141 = vmatpush1.bf16.xpose.msra.mxu0 0
        %1142 = vmatprep.subr.bf16.mxu0 0
        %1143 = vmatpush1.bf16.xpose.msra.mxu0 0
        %1144 = vmatprep.subr.bf16.mxu0 0
        %1145 = vmatpush1.bf16.xpose.msra.mxu0 0
        %1146 = vmatprep.mubr.bf16.mxu0 0
        %1147 = vmatmul.mubr.bf16.gmra.mrb[0].mxu0 %v1109
        %v1148 = vpop.f32.mrb[0].mxu0
        %v1149 = vadd.f32 %v823, %v1148
        %v1150 = vpop.f32.mrb[0].mxu0
        %v1151 = vpop.f32.mrb[0].mxu0
        %v1152 = vpop.f32.mrb[0].mxu0
        %1153 = vdwg.mxu0
        %v1154 = vsel %vm833, %v1098, -inf
        %1155 = vmax.xlane.f32.xlu0 %v1154
        %v1156 = vpop.xlane.xlu0 %1155
        %v1157 = vsel %vm833, %v1149, -inf
        %1158 = vmax.xlane.f32.xlu0 %v1157
        %v1159 = vpop.xlane.xlu0 %1158
        %v1160 = vsub.f32 %v1098, %v1156
        %v1161 = vsub.f32 %v1149, %v1159
        %v1162 = vmul.f32 %v1160, 1.442695
        %v1163 = vpow.pop %v1162
        %v1164 = vmul.f32 %v1161, 1.442695
        %v1165 = vpow.pop %v1164
        %v1166 = vsel %vm833, %v1163, 0.0
        %1167 = vadd.xlane.f32.xlu0 %v1166
        %v1168 = vpop.xlane.xlu0 %1167
        %v1169 = vsel %vm833, %v1165, 0.0
        %1170 = vadd.xlane.f32.xlu0 %v1169
        %v1171 = vpop.xlane.xlu0 %1170
        %v1172 = vrcp.pop %v1168
        %v1173 = vrcp.pop %v1171
        %v1174 = vmul.f32 %v1163, %v1172
        %v1175 = vmul.f32 %v1165, %v1173
        %v1176 = vpack.c.bf16 %v1174, %v1174
        %v1177 = vpack.c.bf16 %v1175, %v1175
        %1178 = vrot.lane.b32.xlu0 %v828, 56
        %v1179 = vpop.permute.xlu0 %1178
        %v1181 = vsel %vm833, %v1176, 0
        %v1184 = vsel %vm958, %v1179, 0
        %1186 = vmatprep.subr.bf16.mxu0 0
        %1187 = vmatpush1.bf16.msra.mxu0 %v1184
        %1188 = vmatprep.subr.bf16.mxu0 0
        %1189 = vmatpush1.bf16.msra.mxu0 0
        %1190 = vmatprep.subr.bf16.mxu0 0
        %1191 = vmatpush1.bf16.msra.mxu0 0
        %1192 = vmatprep.subr.bf16.mxu0 0
        %1193 = vmatpush1.bf16.msra.mxu0 0
        %1194 = vmatprep.subr.bf16.mxu0 0
        %1195 = vmatpush1.bf16.msra.mxu0 0
        %1196 = vmatprep.subr.bf16.mxu0 0
        %1197 = vmatpush1.bf16.msra.mxu0 0
        %1198 = vmatprep.subr.bf16.mxu0 0
        %1199 = vmatpush1.bf16.msra.mxu0 0
        %1200 = vmatprep.subr.bf16.mxu0 0
        %1201 = vmatpush1.bf16.msra.mxu0 0
        %1202 = vmatprep.subr.bf16.mxu0 0
        %1203 = vmatpush1.bf16.msra.mxu0 0
        %1204 = vmatprep.subr.bf16.mxu0 0
        %1205 = vmatpush1.bf16.msra.mxu0 0
        %1206 = vmatprep.subr.bf16.mxu0 0
        %1207 = vmatpush1.bf16.msra.mxu0 0
        %1208 = vmatprep.subr.bf16.mxu0 0
        %1209 = vmatpush1.bf16.msra.mxu0 0
        %1210 = vmatprep.subr.bf16.mxu0 0
        %1211 = vmatpush1.bf16.msra.mxu0 0
        %1212 = vmatprep.subr.bf16.mxu0 0
        %1213 = vmatpush1.bf16.msra.mxu0 0
        %1214 = vmatprep.subr.bf16.mxu0 0
        %1215 = vmatpush1.bf16.msra.mxu0 0
        %1216 = vmatprep.subr.bf16.mxu0 0
        %1217 = vmatpush1.bf16.msra.mxu0 0
        %1218 = vmatprep.mubr.bf16.mxu0 0
        %1219 = vmatmul.mubr.bf16.gmra.mrb[0].mxu0 %v1181
        %v1220 = vpop.f32.mrb[0].mxu0
        %v1221 = vadd.f32 0.0, %v1220
        %v1222 = vpop.f32.mrb[0].mxu0
        %v1223 = vpop.f32.mrb[0].mxu0
        %v1224 = vpop.f32.mrb[0].mxu0
        %1225 = vdwg.mxu0
        %1226 = vrot.lane.b32.xlu0 %v829, 56
        %v1227 = vpop.permute.xlu0 %1226
        %v1229 = vsel %vm833, %v1177, 0
        %v1232 = vsel %vm958, %v1227, 0
        %1234 = vmatprep.subr.bf16.mxu0 0
        %1235 = vmatpush1.bf16.msra.mxu0 %v1232
        %1236 = vmatprep.subr.bf16.mxu0 0
        %1237 = vmatpush1.bf16.msra.mxu0 0
        %1238 = vmatprep.subr.bf16.mxu0 0
        %1239 = vmatpush1.bf16.msra.mxu0 0
        %1240 = vmatprep.subr.bf16.mxu0 0
        %1241 = vmatpush1.bf16.msra.mxu0 0
        %1242 = vmatprep.subr.bf16.mxu0 0
        %1243 = vmatpush1.bf16.msra.mxu0 0
        %1244 = vmatprep.subr.bf16.mxu0 0
        %1245 = vmatpush1.bf16.msra.mxu0 0
        %1246 = vmatprep.subr.bf16.mxu0 0
        %1247 = vmatpush1.bf16.msra.mxu0 0
        %1248 = vmatprep.subr.bf16.mxu0 0
        %1249 = vmatpush1.bf16.msra.mxu0 0
        %1250 = vmatprep.subr.bf16.mxu0 0
        %1251 = vmatpush1.bf16.msra.mxu0 0
        %1252 = vmatprep.subr.bf16.mxu0 0
        %1253 = vmatpush1.bf16.msra.mxu0 0
        %1254 = vmatprep.subr.bf16.mxu0 0
        %1255 = vmatpush1.bf16.msra.mxu0 0
        %1256 = vmatprep.subr.bf16.mxu0 0
        %1257 = vmatpush1.bf16.msra.mxu0 0
        %1258 = vmatprep.subr.bf16.mxu0 0
        %1259 = vmatpush1.bf16.msra.mxu0 0
        %1260 = vmatprep.subr.bf16.mxu0 0
        %1261 = vmatpush1.bf16.msra.mxu0 0
        %1262 = vmatprep.subr.bf16.mxu0 0
        %1263 = vmatpush1.bf16.msra.mxu0 0
        %1264 = vmatprep.subr.bf16.mxu0 0
        %1265 = vmatpush1.bf16.msra.mxu0 0
        %1266 = vmatprep.mubr.bf16.mxu0 0
        %1267 = vmatmul.mubr.bf16.gmra.mrb[0].mxu0 %v1229
        %v1268 = vpop.f32.mrb[0].mxu0
        %v1269 = vadd.f32 0.0, %v1268
        %v1270 = vpop.f32.mrb[0].mxu0
        %v1271 = vpop.f32.mrb[0].mxu0
        %v1272 = vpop.f32.mrb[0].mxu0
        %1273 = vdwg.mxu0
        %1276 = vrot.lane.b32.xlu0 %v1221, 8
        %v1277 = vpop.permute.xlu0 %1276
        %1278 = vrot.lane.b32.xlu0 %v1269, 8
        %v1279 = vpop.permute.xlu0 %1278
        %vm1282 = vcmask 130112
        %1283 = vst.msk [vmem:[#allocation3] sm:$0xff] %vm1282, %v1277
        %1284 = vst.msk [vmem:[#allocation3 + $0x8] sm:$0xff] %vm1282, %v1279
        %1285 = vrot.lane.b32.xlu0 %v826, 112
        %v1286 = vpop.permute.xlu0 %1285
        %1287 = vrot.lane.b32.xlu0 %v828, 80
        %v1288 = vpop.permute.xlu0 %1287
        %v1290 = vsel %vm833, %v1286, 0
        %v1293 = vsel %vm833, %v1288, 0
        %1295 = vmatprep.subr.bf16.mxu0 0
        %1296 = vmatpush1.bf16.xpose.msra.mxu0 %v1293
        %1297 = vmatprep.subr.bf16.mxu0 0
        %1298 = vmatpush1.bf16.xpose.msra.mxu0 0
        %1299 = vmatprep.subr.bf16.mxu0 0
        %1300 = vmatpush1.bf16.xpose.msra.mxu0 0
        %1301 = vmatprep.subr.bf16.mxu0 0
        %1302 = vmatpush1.bf16.xpose.msra.mxu0 0
        %1303 = vmatprep.subr.bf16.mxu0 0
        %1304 = vmatpush1.bf16.xpose.msra.mxu0 0
        %1305 = vmatprep.subr.bf16.mxu0 0
        %1306 = vmatpush1.bf16.xpose.msra.mxu0 0
        %1307 = vmatprep.subr.bf16.mxu0 0
        %1308 = vmatpush1.bf16.xpose.msra.mxu0 0
        %1309 = vmatprep.subr.bf16.mxu0 0
        %1310 = vmatpush1.bf16.xpose.msra.mxu0 0
        %1311 = vmatprep.subr.bf16.mxu0 0
        %1312 = vmatpush1.bf16.xpose.msra.mxu0 0
        %1313 = vmatprep.subr.bf16.mxu0 0
        %1314 = vmatpush1.bf16.xpose.msra.mxu0 0
        %1315 = vmatprep.subr.bf16.mxu0 0
        %1316 = vmatpush1.bf16.xpose.msra.mxu0 0
        %1317 = vmatprep.subr.bf16.mxu0 0
        %1318 = vmatpush1.bf16.xpose.msra.mxu0 0
        %1319 = vmatprep.subr.bf16.mxu0 0
        %1320 = vmatpush1.bf16.xpose.msra.mxu0 0
        %1321 = vmatprep.subr.bf16.mxu0 0
        %1322 = vmatpush1.bf16.xpose.msra.mxu0 0
        %1323 = vmatprep.subr.bf16.mxu0 0
        %1324 = vmatpush1.bf16.xpose.msra.mxu0 0
        %1325 = vmatprep.subr.bf16.mxu0 0
        %1326 = vmatpush1.bf16.xpose.msra.mxu0 0
        %1327 = vmatprep.mubr.bf16.mxu0 0
        %1328 = vmatmul.mubr.bf16.gmra.mrb[0].mxu0 %v1290
        %v1329 = vpop.f32.mrb[0].mxu0
        %v1330 = vadd.f32 %v823, %v1329
        %v1331 = vpop.f32.mrb[0].mxu0
        %v1332 = vpop.f32.mrb[0].mxu0
        %v1333 = vpop.f32.mrb[0].mxu0
        %1334 = vdwg.mxu0
        %1335 = vrot.lane.b32.xlu0 %v827, 112
        %v1336 = vpop.permute.xlu0 %1335
        %1337 = vrot.lane.b32.xlu0 %v829, 80
        %v1338 = vpop.permute.xlu0 %1337
        %v1340 = vsel %vm833, %v1336, 0
        %v1343 = vsel %vm833, %v1338, 0
        %1345 = vmatprep.subr.bf16.mxu0 0
        %1346 = vmatpush1.bf16.xpose.msra.mxu0 %v1343
        %1347 = vmatprep.subr.bf16.mxu0 0
        %1348 = vmatpush1.bf16.xpose.msra.mxu0 0
        %1349 = vmatprep.subr.bf16.mxu0 0
        %1350 = vmatpush1.bf16.xpose.msra.mxu0 0
        %1351 = vmatprep.subr.bf16.mxu0 0
        %1352 = vmatpush1.bf16.xpose.msra.mxu0 0
        %1353 = vmatprep.subr.bf16.mxu0 0
        %1354 = vmatpush1.bf16.xpose.msra.mxu0 0
        %1355 = vmatprep.subr.bf16.mxu0 0
        %1356 = vmatpush1.bf16.xpose.msra.mxu0 0
        %1357 = vmatprep.subr.bf16.mxu0 0
        %1358 = vmatpush1.bf16.xpose.msra.mxu0 0
        %1359 = vmatprep.subr.bf16.mxu0 0
        %1360 = vmatpush1.bf16.xpose.msra.mxu0 0
        %1361 = vmatprep.subr.bf16.mxu0 0
        %1362 = vmatpush1.bf16.xpose.msra.mxu0 0
        %1363 = vmatprep.subr.bf16.mxu0 0
        %1364 = vmatpush1.bf16.xpose.msra.mxu0 0
        %1365 = vmatprep.subr.bf16.mxu0 0
        %1366 = vmatpush1.bf16.xpose.msra.mxu0 0
        %1367 = vmatprep.subr.bf16.mxu0 0
        %1368 = vmatpush1.bf16.xpose.msra.mxu0 0
        %1369 = vmatprep.subr.bf16.mxu0 0
        %1370 = vmatpush1.bf16.xpose.msra.mxu0 0
        %1371 = vmatprep.subr.bf16.mxu0 0
        %1372 = vmatpush1.bf16.xpose.msra.mxu0 0
        %1373 = vmatprep.subr.bf16.mxu0 0
        %1374 = vmatpush1.bf16.xpose.msra.mxu0 0
        %1375 = vmatprep.subr.bf16.mxu0 0
        %1376 = vmatpush1.bf16.xpose.msra.mxu0 0
        %1377 = vmatprep.mubr.bf16.mxu0 0
        %1378 = vmatmul.mubr.bf16.gmra.mrb[0].mxu0 %v1340
        %v1379 = vpop.f32.mrb[0].mxu0
        %v1380 = vadd.f32 %v823, %v1379
        %v1381 = vpop.f32.mrb[0].mxu0
        %v1382 = vpop.f32.mrb[0].mxu0
        %v1383 = vpop.f32.mrb[0].mxu0
        %1384 = vdwg.mxu0
        %v1385 = vsel %vm833, %v1330, -inf
        %1386 = vmax.xlane.f32.xlu0 %v1385
        %v1387 = vpop.xlane.xlu0 %1386
        %v1388 = vsel %vm833, %v1380, -inf
        %1389 = vmax.xlane.f32.xlu0 %v1388
        %v1390 = vpop.xlane.xlu0 %1389
        %v1391 = vsub.f32 %v1330, %v1387
        %v1392 = vsub.f32 %v1380, %v1390
        %v1393 = vmul.f32 %v1391, 1.442695
        %v1394 = vpow.pop %v1393
        %v1395 = vmul.f32 %v1392, 1.442695
        %v1396 = vpow.pop %v1395
        %v1397 = vsel %vm833, %v1394, 0.0
        %1398 = vadd.xlane.f32.xlu0 %v1397
        %v1399 = vpop.xlane.xlu0 %1398
        %v1400 = vsel %vm833, %v1396, 0.0
        %1401 = vadd.xlane.f32.xlu0 %v1400
        %v1402 = vpop.xlane.xlu0 %1401
        %v1403 = vrcp.pop %v1399
        %v1404 = vrcp.pop %v1402
        %v1405 = vmul.f32 %v1394, %v1403
        %v1406 = vmul.f32 %v1396, %v1404
        %v1407 = vpack.c.bf16 %v1405, %v1405
        %v1408 = vpack.c.bf16 %v1406, %v1406
        %1409 = vrot.lane.b32.xlu0 %v828, 48
        %v1410 = vpop.permute.xlu0 %1409
        %v1412 = vsel %vm833, %v1407, 0
        %v1415 = vsel %vm958, %v1410, 0
        %1417 = vmatprep.subr.bf16.mxu0 0
        %1418 = vmatpush1.bf16.msra.mxu0 %v1415
        %1419 = vmatprep.subr.bf16.mxu0 0
        %1420 = vmatpush1.bf16.msra.mxu0 0
        %1421 = vmatprep.subr.bf16.mxu0 0
        %1422 = vmatpush1.bf16.msra.mxu0 0
        %1423 = vmatprep.subr.bf16.mxu0 0
        %1424 = vmatpush1.bf16.msra.mxu0 0
        %1425 = vmatprep.subr.bf16.mxu0 0
        %1426 = vmatpush1.bf16.msra.mxu0 0
        %1427 = vmatprep.subr.bf16.mxu0 0
        %1428 = vmatpush1.bf16.msra.mxu0 0
        %1429 = vmatprep.subr.bf16.mxu0 0
        %1430 = vmatpush1.bf16.msra.mxu0 0
        %1431 = vmatprep.subr.bf16.mxu0 0
        %1432 = vmatpush1.bf16.msra.mxu0 0
        %1433 = vmatprep.subr.bf16.mxu0 0
        %1434 = vmatpush1.bf16.msra.mxu0 0
        %1435 = vmatprep.subr.bf16.mxu0 0
        %1436 = vmatpush1.bf16.msra.mxu0 0
        %1437 = vmatprep.subr.bf16.mxu0 0
        %1438 = vmatpush1.bf16.msra.mxu0 0
        %1439 = vmatprep.subr.bf16.mxu0 0
        %1440 = vmatpush1.bf16.msra.mxu0 0
        %1441 = vmatprep.subr.bf16.mxu0 0
        %1442 = vmatpush1.bf16.msra.mxu0 0
        %1443 = vmatprep.subr.bf16.mxu0 0
        %1444 = vmatpush1.bf16.msra.mxu0 0
        %1445 = vmatprep.subr.bf16.mxu0 0
        %1446 = vmatpush1.bf16.msra.mxu0 0
        %1447 = vmatprep.subr.bf16.mxu0 0
        %1448 = vmatpush1.bf16.msra.mxu0 0
        %1449 = vmatprep.mubr.bf16.mxu0 0
        %1450 = vmatmul.mubr.bf16.gmra.mrb[0].mxu0 %v1412
        %v1451 = vpop.f32.mrb[0].mxu0
        %v1452 = vadd.f32 0.0, %v1451
        %v1453 = vpop.f32.mrb[0].mxu0
        %v1454 = vpop.f32.mrb[0].mxu0
        %v1455 = vpop.f32.mrb[0].mxu0
        %1456 = vdwg.mxu0
        %1457 = vrot.lane.b32.xlu0 %v829, 48
        %v1458 = vpop.permute.xlu0 %1457
        %v1460 = vsel %vm833, %v1408, 0
        %v1463 = vsel %vm958, %v1458, 0
        %1465 = vmatprep.subr.bf16.mxu0 0
        %1466 = vmatpush1.bf16.msra.mxu0 %v1463
        %1467 = vmatprep.subr.bf16.mxu0 0
        %1468 = vmatpush1.bf16.msra.mxu0 0
        %1469 = vmatprep.subr.bf16.mxu0 0
        %1470 = vmatpush1.bf16.msra.mxu0 0
        %1471 = vmatprep.subr.bf16.mxu0 0
        %1472 = vmatpush1.bf16.msra.mxu0 0
        %1473 = vmatprep.subr.bf16.mxu0 0
        %1474 = vmatpush1.bf16.msra.mxu0 0
        %1475 = vmatprep.subr.bf16.mxu0 0
        %1476 = vmatpush1.bf16.msra.mxu0 0
        %1477 = vmatprep.subr.bf16.mxu0 0
        %1478 = vmatpush1.bf16.msra.mxu0 0
        %1479 = vmatprep.subr.bf16.mxu0 0
        %1480 = vmatpush1.bf16.msra.mxu0 0
        %1481 = vmatprep.subr.bf16.mxu0 0
        %1482 = vmatpush1.bf16.msra.mxu0 0
        %1483 = vmatprep.subr.bf16.mxu0 0
        %1484 = vmatpush1.bf16.msra.mxu0 0
        %1485 = vmatprep.subr.bf16.mxu0 0
        %1486 = vmatpush1.bf16.msra.mxu0 0
        %1487 = vmatprep.subr.bf16.mxu0 0
        %1488 = vmatpush1.bf16.msra.mxu0 0
        %1489 = vmatprep.subr.bf16.mxu0 0
        %1490 = vmatpush1.bf16.msra.mxu0 0
        %1491 = vmatprep.subr.bf16.mxu0 0
        %1492 = vmatpush1.bf16.msra.mxu0 0
        %1493 = vmatprep.subr.bf16.mxu0 0
        %1494 = vmatpush1.bf16.msra.mxu0 0
        %1495 = vmatprep.subr.bf16.mxu0 0
        %1496 = vmatpush1.bf16.msra.mxu0 0
        %1497 = vmatprep.mubr.bf16.mxu0 0
        %1498 = vmatmul.mubr.bf16.gmra.mrb[0].mxu0 %v1460
        %v1499 = vpop.f32.mrb[0].mxu0
        %v1500 = vadd.f32 0.0, %v1499
        %v1501 = vpop.f32.mrb[0].mxu0
        %v1502 = vpop.f32.mrb[0].mxu0
        %v1503 = vpop.f32.mrb[0].mxu0
        %1504 = vdwg.mxu0
        %1507 = vrot.lane.b32.xlu0 %v1452, 16
        %v1508 = vpop.permute.xlu0 %1507
        %1509 = vrot.lane.b32.xlu0 %v1500, 16
        %v1510 = vpop.permute.xlu0 %1509
        %vm1513 = vcmask 195712
        %1514 = vst.msk [vmem:[#allocation3] sm:$0xff] %vm1513, %v1508
        %1515 = vst.msk [vmem:[#allocation3 + $0x8] sm:$0xff] %vm1513, %v1510
        %1516 = vrot.lane.b32.xlu0 %v826, 104
        %v1517 = vpop.permute.xlu0 %1516
        %1518 = vrot.lane.b32.xlu0 %v828, 72
        %v1519 = vpop.permute.xlu0 %1518
        %v1521 = vsel %vm833, %v1517, 0
        %v1524 = vsel %vm833, %v1519, 0
        %1526 = vmatprep.subr.bf16.mxu0 0
        %1527 = vmatpush1.bf16.xpose.msra.mxu0 %v1524
        %1528 = vmatprep.subr.bf16.mxu0 0
        %1529 = vmatpush1.bf16.xpose.msra.mxu0 0
        %1530 = vmatprep.subr.bf16.mxu0 0
        %1531 = vmatpush1.bf16.xpose.msra.mxu0 0
        %1532 = vmatprep.subr.bf16.mxu0 0
        %1533 = vmatpush1.bf16.xpose.msra.mxu0 0
        %1534 = vmatprep.subr.bf16.mxu0 0
        %1535 = vmatpush1.bf16.xpose.msra.mxu0 0
        %1536 = vmatprep.subr.bf16.mxu0 0
        %1537 = vmatpush1.bf16.xpose.msra.mxu0 0
        %1538 = vmatprep.subr.bf16.mxu0 0
        %1539 = vmatpush1.bf16.xpose.msra.mxu0 0
        %1540 = vmatprep.subr.bf16.mxu0 0
        %1541 = vmatpush1.bf16.xpose.msra.mxu0 0
        %1542 = vmatprep.subr.bf16.mxu0 0
        %1543 = vmatpush1.bf16.xpose.msra.mxu0 0
        %1544 = vmatprep.subr.bf16.mxu0 0
        %1545 = vmatpush1.bf16.xpose.msra.mxu0 0
        %1546 = vmatprep.subr.bf16.mxu0 0
        %1547 = vmatpush1.bf16.xpose.msra.mxu0 0
        %1548 = vmatprep.subr.bf16.mxu0 0
        %1549 = vmatpush1.bf16.xpose.msra.mxu0 0
        %1550 = vmatprep.subr.bf16.mxu0 0
        %1551 = vmatpush1.bf16.xpose.msra.mxu0 0
        %1552 = vmatprep.subr.bf16.mxu0 0
        %1553 = vmatpush1.bf16.xpose.msra.mxu0 0
        %1554 = vmatprep.subr.bf16.mxu0 0
        %1555 = vmatpush1.bf16.xpose.msra.mxu0 0
        %1556 = vmatprep.subr.bf16.mxu0 0
        %1557 = vmatpush1.bf16.xpose.msra.mxu0 0
        %1558 = vmatprep.mubr.bf16.mxu0 0
        %1559 = vmatmul.mubr.bf16.gmra.mrb[0].mxu0 %v1521
        %v1560 = vpop.f32.mrb[0].mxu0
        %v1561 = vadd.f32 %v823, %v1560
        %v1562 = vpop.f32.mrb[0].mxu0
        %v1563 = vpop.f32.mrb[0].mxu0
        %v1564 = vpop.f32.mrb[0].mxu0
        %1565 = vdwg.mxu0
        %1566 = vrot.lane.b32.xlu0 %v827, 104
        %v1567 = vpop.permute.xlu0 %1566
        %1568 = vrot.lane.b32.xlu0 %v829, 72
        %v1569 = vpop.permute.xlu0 %1568
        %v1571 = vsel %vm833, %v1567, 0
        %v1574 = vsel %vm833, %v1569, 0
        %1576 = vmatprep.subr.bf16.mxu0 0
        %1577 = vmatpush1.bf16.xpose.msra.mxu0 %v1574
        %1578 = vmatprep.subr.bf16.mxu0 0
        %1579 = vmatpush1.bf16.xpose.msra.mxu0 0
        %1580 = vmatprep.subr.bf16.mxu0 0
        %1581 = vmatpush1.bf16.xpose.msra.mxu0 0
        %1582 = vmatprep.subr.bf16.mxu0 0
        %1583 = vmatpush1.bf16.xpose.msra.mxu0 0
        %1584 = vmatprep.subr.bf16.mxu0 0
        %1585 = vmatpush1.bf16.xpose.msra.mxu0 0
        %1586 = vmatprep.subr.bf16.mxu0 0
        %1587 = vmatpush1.bf16.xpose.msra.mxu0 0
        %1588 = vmatprep.subr.bf16.mxu0 0
        %1589 = vmatpush1.bf16.xpose.msra.mxu0 0
        %1590 = vmatprep.subr.bf16.mxu0 0
        %1591 = vmatpush1.bf16.xpose.msra.mxu0 0
        %1592 = vmatprep.subr.bf16.mxu0 0
        %1593 = vmatpush1.bf16.xpose.msra.mxu0 0
        %1594 = vmatprep.subr.bf16.mxu0 0
        %1595 = vmatpush1.bf16.xpose.msra.mxu0 0
        %1596 = vmatprep.subr.bf16.mxu0 0
        %1597 = vmatpush1.bf16.xpose.msra.mxu0 0
        %1598 = vmatprep.subr.bf16.mxu0 0
        %1599 = vmatpush1.bf16.xpose.msra.mxu0 0
        %1600 = vmatprep.subr.bf16.mxu0 0
        %1601 = vmatpush1.bf16.xpose.msra.mxu0 0
        %1602 = vmatprep.subr.bf16.mxu0 0
        %1603 = vmatpush1.bf16.xpose.msra.mxu0 0
        %1604 = vmatprep.subr.bf16.mxu0 0
        %1605 = vmatpush1.bf16.xpose.msra.mxu0 0
        %1606 = vmatprep.subr.bf16.mxu0 0
        %1607 = vmatpush1.bf16.xpose.msra.mxu0 0
        %1608 = vmatprep.mubr.bf16.mxu0 0
        %1609 = vmatmul.mubr.bf16.gmra.mrb[0].mxu0 %v1571
        %v1610 = vpop.f32.mrb[0].mxu0
        %v1611 = vadd.f32 %v823, %v1610
        %v1612 = vpop.f32.mrb[0].mxu0
        %v1613 = vpop.f32.mrb[0].mxu0
        %v1614 = vpop.f32.mrb[0].mxu0
        %1615 = vdwg.mxu0
        %v1616 = vsel %vm833, %v1561, -inf
        %1617 = vmax.xlane.f32.xlu0 %v1616
        %v1618 = vpop.xlane.xlu0 %1617
        %v1619 = vsel %vm833, %v1611, -inf
        %1620 = vmax.xlane.f32.xlu0 %v1619
        %v1621 = vpop.xlane.xlu0 %1620
        %v1622 = vsub.f32 %v1561, %v1618
        %v1623 = vsub.f32 %v1611, %v1621
        %v1624 = vmul.f32 %v1622, 1.442695
        %v1625 = vpow.pop %v1624
        %v1626 = vmul.f32 %v1623, 1.442695
        %v1627 = vpow.pop %v1626
        %v1628 = vsel %vm833, %v1625, 0.0
        %1629 = vadd.xlane.f32.xlu0 %v1628
        %v1630 = vpop.xlane.xlu0 %1629
        %v1631 = vsel %vm833, %v1627, 0.0
        %1632 = vadd.xlane.f32.xlu0 %v1631
        %v1633 = vpop.xlane.xlu0 %1632
        %v1634 = vrcp.pop %v1630
        %v1635 = vrcp.pop %v1633
        %v1636 = vmul.f32 %v1625, %v1634
        %v1637 = vmul.f32 %v1627, %v1635
        %v1638 = vpack.c.bf16 %v1636, %v1636
        %v1639 = vpack.c.bf16 %v1637, %v1637
        %1640 = vrot.lane.b32.xlu0 %v828, 40
        %v1641 = vpop.permute.xlu0 %1640
        %v1643 = vsel %vm833, %v1638, 0
        %v1646 = vsel %vm958, %v1641, 0
        %1648 = vmatprep.subr.bf16.mxu0 0
        %1649 = vmatpush1.bf16.msra.mxu0 %v1646
        %1650 = vmatprep.subr.bf16.mxu0 0
        %1651 = vmatpush1.bf16.msra.mxu0 0
        %1652 = vmatprep.subr.bf16.mxu0 0
        %1653 = vmatpush1.bf16.msra.mxu0 0
        %1654 = vmatprep.subr.bf16.mxu0 0
        %1655 = vmatpush1.bf16.msra.mxu0 0
        %1656 = vmatprep.subr.bf16.mxu0 0
        %1657 = vmatpush1.bf16.msra.mxu0 0
        %1658 = vmatprep.subr.bf16.mxu0 0
        %1659 = vmatpush1.bf16.msra.mxu0 0
        %1660 = vmatprep.subr.bf16.mxu0 0
        %1661 = vmatpush1.bf16.msra.mxu0 0
        %1662 = vmatprep.subr.bf16.mxu0 0
        %1663 = vmatpush1.bf16.msra.mxu0 0
        %1664 = vmatprep.subr.bf16.mxu0 0
        %1665 = vmatpush1.bf16.msra.mxu0 0
        %1666 = vmatprep.subr.bf16.mxu0 0
        %1667 = vmatpush1.bf16.msra.mxu0 0
        %1668 = vmatprep.subr.bf16.mxu0 0
        %1669 = vmatpush1.bf16.msra.mxu0 0
        %1670 = vmatprep.subr.bf16.mxu0 0
        %1671 = vmatpush1.bf16.msra.mxu0 0
        %1672 = vmatprep.subr.bf16.mxu0 0
        %1673 = vmatpush1.bf16.msra.mxu0 0
        %1674 = vmatprep.subr.bf16.mxu0 0
        %1675 = vmatpush1.bf16.msra.mxu0 0
        %1676 = vmatprep.subr.bf16.mxu0 0
        %1677 = vmatpush1.bf16.msra.mxu0 0
        %1678 = vmatprep.subr.bf16.mxu0 0
        %1679 = vmatpush1.bf16.msra.mxu0 0
        %1680 = vmatprep.mubr.bf16.mxu0 0
        %1681 = vmatmul.mubr.bf16.gmra.mrb[0].mxu0 %v1643
        %v1682 = vpop.f32.mrb[0].mxu0
        %v1683 = vadd.f32 0.0, %v1682
        %v1684 = vpop.f32.mrb[0].mxu0
        %v1685 = vpop.f32.mrb[0].mxu0
        %v1686 = vpop.f32.mrb[0].mxu0
        %1687 = vdwg.mxu0
        %1688 = vrot.lane.b32.xlu0 %v829, 40
        %v1689 = vpop.permute.xlu0 %1688
        %v1691 = vsel %vm833, %v1639, 0
        %v1694 = vsel %vm958, %v1689, 0
        %1696 = vmatprep.subr.bf16.mxu0 0
        %1697 = vmatpush1.bf16.msra.mxu0 %v1694
        %1698 = vmatprep.subr.bf16.mxu0 0
        %1699 = vmatpush1.bf16.msra.mxu0 0
        %1700 = vmatprep.subr.bf16.mxu0 0
        %1701 = vmatpush1.bf16.msra.mxu0 0
        %1702 = vmatprep.subr.bf16.mxu0 0
        %1703 = vmatpush1.bf16.msra.mxu0 0
        %1704 = vmatprep.subr.bf16.mxu0 0
        %1705 = vmatpush1.bf16.msra.mxu0 0
        %1706 = vmatprep.subr.bf16.mxu0 0
        %1707 = vmatpush1.bf16.msra.mxu0 0
        %1708 = vmatprep.subr.bf16.mxu0 0
        %1709 = vmatpush1.bf16.msra.mxu0 0
        %1710 = vmatprep.subr.bf16.mxu0 0
        %1711 = vmatpush1.bf16.msra.mxu0 0
        %1712 = vmatprep.subr.bf16.mxu0 0
        %1713 = vmatpush1.bf16.msra.mxu0 0
        %1714 = vmatprep.subr.bf16.mxu0 0
        %1715 = vmatpush1.bf16.msra.mxu0 0
        %1716 = vmatprep.subr.bf16.mxu0 0
        %1717 = vmatpush1.bf16.msra.mxu0 0
        %1718 = vmatprep.subr.bf16.mxu0 0
        %1719 = vmatpush1.bf16.msra.mxu0 0
        %1720 = vmatprep.subr.bf16.mxu0 0
        %1721 = vmatpush1.bf16.msra.mxu0 0
        %1722 = vmatprep.subr.bf16.mxu0 0
        %1723 = vmatpush1.bf16.msra.mxu0 0
        %1724 = vmatprep.subr.bf16.mxu0 0
        %1725 = vmatpush1.bf16.msra.mxu0 0
        %1726 = vmatprep.subr.bf16.mxu0 0
        %1727 = vmatpush1.bf16.msra.mxu0 0
        %1728 = vmatprep.mubr.bf16.mxu0 0
        %1729 = vmatmul.mubr.bf16.gmra.mrb[0].mxu0 %v1691
        %v1730 = vpop.f32.mrb[0].mxu0
        %v1731 = vadd.f32 0.0, %v1730
        %v1732 = vpop.f32.mrb[0].mxu0
        %v1733 = vpop.f32.mrb[0].mxu0
        %v1734 = vpop.f32.mrb[0].mxu0
        %1735 = vdwg.mxu0
        %1738 = vrot.lane.b32.xlu0 %v1683, 24
        %v1739 = vpop.permute.xlu0 %1738
        %1740 = vrot.lane.b32.xlu0 %v1731, 24
        %v1741 = vpop.permute.xlu0 %1740
        %vm1744 = vcmask 261312
        %1745 = vst.msk [vmem:[#allocation3] sm:$0xff] %vm1744, %v1739
        %1746 = vst.msk [vmem:[#allocation3 + $0x8] sm:$0xff] %vm1744, %v1741
        %v1747 = vld [vmem:[#allocation3] sm:$0xff]
        %v1748 = vld [vmem:[#allocation3 + $0x8] sm:$0xff]
        %v1749 = vpack.c.bf16 %v1748, %v1747
        %v1750 = vld [vmem:[%s666] sm:$0xf]
        %v1751 = vld [vmem:[%s666 + $0x4] sm:$0xf]
        %v1752 = vld [vmem:[%s666 + $0x8] sm:$0xf]
        %v1753 = vld [vmem:[%s666 + $0xc] sm:$0xf]
        %v1758 = vunpack.c.l.b16 %v1750
        %v1759 = vunpack.c.l.b16 %v1751
        %v1760 = vunpack.c.l.b16 %v1752
        %v1761 = vunpack.c.l.b16 %v1753
        %v1762 = vpack.c.b16 %v1759, %v1758
        %v1763 = vpack.c.b16 %v1761, %v1760
        %v1767 = vsel %vm711, %v1749, 0
        %1769 = vmatprep.subr.bf16.mxu0 0
        %1770 = vmatpush1.bf16.msra.mxu0 %v1762
        %1771 = vmatprep.subr.bf16.mxu0 0
        %1772 = vmatpush1.bf16.msra.mxu0 %v1763
        %1773 = vmatprep.subr.bf16.mxu0 0
        %1774 = vmatpush1.bf16.msra.mxu0 0
        %1775 = vmatprep.subr.bf16.mxu0 0
        %1776 = vmatpush1.bf16.msra.mxu0 0
        %1777 = vmatprep.subr.bf16.mxu0 0
        %1778 = vmatpush1.bf16.msra.mxu0 0
        %1779 = vmatprep.subr.bf16.mxu0 0
        %1780 = vmatpush1.bf16.msra.mxu0 0
        %1781 = vmatprep.subr.bf16.mxu0 0
        %1782 = vmatpush1.bf16.msra.mxu0 0
        %1783 = vmatprep.subr.bf16.mxu0 0
        %1784 = vmatpush1.bf16.msra.mxu0 0
        %1785 = vmatprep.subr.bf16.mxu0 0
        %1786 = vmatpush1.bf16.msra.mxu0 0
        %1787 = vmatprep.subr.bf16.mxu0 0
        %1788 = vmatpush1.bf16.msra.mxu0 0
        %1789 = vmatprep.subr.bf16.mxu0 0
        %1790 = vmatpush1.bf16.msra.mxu0 0
        %1791 = vmatprep.subr.bf16.mxu0 0
        %1792 = vmatpush1.bf16.msra.mxu0 0
        %1793 = vmatprep.subr.bf16.mxu0 0
        %1794 = vmatpush1.bf16.msra.mxu0 0
        %1795 = vmatprep.subr.bf16.mxu0 0
        %1796 = vmatpush1.bf16.msra.mxu0 0
        %1797 = vmatprep.subr.bf16.mxu0 0
        %1798 = vmatpush1.bf16.msra.mxu0 0
        %1799 = vmatprep.subr.bf16.mxu0 0
        %1800 = vmatpush1.bf16.msra.mxu0 0
        %1801 = vmatprep.mubr.bf16.mxu0 0
        %1802 = vmatmul.mubr.bf16.gmra.mrb[0].mxu0 %v1767
        %v1803 = vpop.f32.mrb[0].mxu0
        %v1804 = vadd.f32 0.0, %v1803
        %v1805 = vpop.f32.mrb[0].mxu0
        %v1806 = vpop.f32.mrb[0].mxu0
        %v1807 = vadd.f32 0.0, %v1806
        %v1808 = vpop.f32.mrb[0].mxu0
        %1809 = vdwg.mxu0
        %v1810 = vadd.f32 %v707, %v1804
        %v1811 = vadd.f32 %v708, %v1807
        %v1812 = vld [vmem:[%s669] sm:$0x1]
        %v1814 = vlaneseq
        %v1815 = vshrl.u32 %v1814, 7
        %v1816 = vsub.s32 0, %v1815
        %v1817 = vrot.slane %v1812, %v1816
        %v1819 = vadd.f32 %v1810, %v1817
        %v1820 = vadd.f32 %v1811, %v1817
        %v1821 = vld [vmem:[%s672] sm:$0x1]
        %v1822 = vld [vmem:[%s675] sm:$0x1]
        %v1823 = vsel %vm711, %v1819, 0.0
        %1824 = vadd.xlane.f32.xlu0 %v1823
        %v1825 = vpop.xlane.xlu0 %1824
        %v1826 = vsel %vm711, %v1820, 0.0
        %1827 = vadd.xlane.f32.xlu0 %v1826
        %v1828 = vpop.xlane.xlu0 %1827
        %v1829 = vmul.f32 %v1825, %v718
        %v1830 = vmul.f32 %v1828, %v718
        %v1831 = vsub.f32 %v1819, %v1829
        %v1832 = vsub.f32 %v1820, %v1830
        %v1833 = vmul.f32 %v1831, %v1831
        %v1834 = vmul.f32 %v1832, %v1832
        %v1835 = vsel %vm711, %v1833, 0.0
        %1836 = vadd.xlane.f32.xlu0 %v1835
        %v1837 = vpop.xlane.xlu0 %1836
        %v1838 = vsel %vm711, %v1834, 0.0
        %1839 = vadd.xlane.f32.xlu0 %v1838
        %v1840 = vpop.xlane.xlu0 %1839
        %v1841 = vmul.f32 %v1837, %v718
        %v1842 = vmul.f32 %v1840, %v718
        %v1843 = vadd.f32 %v1841, 1e-05
        %v1844 = vadd.f32 %v1842, 1e-05
        %v1845 = vrsqrt.pop %v1843
        %v1846 = vrsqrt.pop %v1844
        %v1847 = vmul.f32 %v1831, %v1845
        %v1848 = vmul.f32 %v1832, %v1846
        %v1850 = vlaneseq
        %v1851 = vshrl.u32 %v1850, 7
        %v1852 = vsub.s32 0, %v1851
        %v1853 = vrot.slane %v1821, %v1852
        %v1855 = vmul.f32 %v1847, %v1853
        %v1856 = vmul.f32 %v1848, %v1853
        %v1858 = vlaneseq
        %v1859 = vshrl.u32 %v1858, 7
        %v1860 = vsub.s32 0, %v1859
        %v1861 = vrot.slane %v1822, %v1860
        %v1863 = vadd.f32 %v1855, %v1861
        %v1864 = vadd.f32 %v1856, %v1861
        %v1865 = vpack.c.bf16 %v1864, %v1863
        %v1866 = vld [vmem:[%s680] sm:$0xf]
        %v1867 = vld [vmem:[%s680 + $0x4] sm:$0xf]
        %v1868 = vld [vmem:[%s680 + $0x8] sm:$0xf]
        %v1869 = vld [vmem:[%s680 + $0xc] sm:$0xf]
        %v1870 = vld [vmem:[%s683] sm:$0x1]
        %v1872 = vlaneseq
        %v1873 = vshrl.u32 %v1872, 7
        %v1874 = vsub.s32 0, %v1873
        %v1875 = vrot.slane %v1870, %v1874
        %v1881 = vunpack.c.l.b16 %v1866
        %v1882 = vunpack.c.l.b16 %v1867
        %v1883 = vunpack.c.l.b16 %v1868
        %v1884 = vunpack.c.l.b16 %v1869
        %v1885 = vpack.c.b16 %v1882, %v1881
        %v1886 = vpack.c.b16 %v1884, %v1883
        %v1890 = vsel %vm711, %v1865, 0
        %1892 = vmatprep.subr.bf16.mxu0 0
        %1893 = vmatpush1.bf16.msra.mxu0 %v1885
        %1894 = vmatprep.subr.bf16.mxu0 0
        %1895 = vmatpush1.bf16.msra.mxu0 %v1886
        %1896 = vmatprep.subr.bf16.mxu0 0
        %1897 = vmatpush1.bf16.msra.mxu0 0
        %1898 = vmatprep.subr.bf16.mxu0 0
        %1899 = vmatpush1.bf16.msra.mxu0 0
        %1900 = vmatprep.subr.bf16.mxu0 0
        %1901 = vmatpush1.bf16.msra.mxu0 0
        %1902 = vmatprep.subr.bf16.mxu0 0
        %1903 = vmatpush1.bf16.msra.mxu0 0
        %1904 = vmatprep.subr.bf16.mxu0 0
        %1905 = vmatpush1.bf16.msra.mxu0 0
        %1906 = vmatprep.subr.bf16.mxu0 0
        %1907 = vmatpush1.bf16.msra.mxu0 0
        %1908 = vmatprep.subr.bf16.mxu0 0
        %1909 = vmatpush1.bf16.msra.mxu0 0
        %1910 = vmatprep.subr.bf16.mxu0 0
        %1911 = vmatpush1.bf16.msra.mxu0 0
        %1912 = vmatprep.subr.bf16.mxu0 0
        %1913 = vmatpush1.bf16.msra.mxu0 0
        %1914 = vmatprep.subr.bf16.mxu0 0
        %1915 = vmatpush1.bf16.msra.mxu0 0
        %1916 = vmatprep.subr.bf16.mxu0 0
        %1917 = vmatpush1.bf16.msra.mxu0 0
        %1918 = vmatprep.subr.bf16.mxu0 0
        %1919 = vmatpush1.bf16.msra.mxu0 0
        %1920 = vmatprep.subr.bf16.mxu0 0
        %1921 = vmatpush1.bf16.msra.mxu0 0
        %1922 = vmatprep.subr.bf16.mxu0 0
        %1923 = vmatpush1.bf16.msra.mxu0 0
        %1924 = vmatprep.mubr.bf16.mxu0 0
        %1925 = vmatmul.mubr.bf16.gmra.mrb[0].mxu0 %v1890
        %v1926 = vpop.f32.mrb[0].mxu0
        %v1927 = vadd.f32 %v1875, %v1926
        %v1928 = vpop.f32.mrb[0].mxu0
        %v1929 = vpop.f32.mrb[0].mxu0
        %v1930 = vadd.f32 %v1875, %v1929
        %v1931 = vpop.f32.mrb[0].mxu0
        %1932 = vdwg.mxu0
        %v1933 = vmul.f32 %v1927, 1.702
        %v1934 = vmul.f32 %v1930, 1.702
        %v1935 = vxor.u32 %v1933, 2147483648
        %v1936 = vxor.u32 %v1934, 2147483648
        %v1937 = vmul.f32 %v1935, 1.442695
        %v1938 = vpow.pop %v1937
        %v1939 = vmul.f32 %v1936, 1.442695
        %v1940 = vpow.pop %v1939
        %v1941 = vadd.f32 %v1938, 1.0
        %v1942 = vadd.f32 %v1940, 1.0
        %v1943 = vrcp.pop %v1941
        %v1944 = vmul.f32 1.0, %v1943
        %v1945 = vrcp.pop %v1942
        %v1946 = vmul.f32 1.0, %v1945
        %v1947 = vmul.f32 %v1927, %v1944
        %v1948 = vmul.f32 %v1930, %v1946
        %v1949 = vpack.c.bf16 %v1948, %v1947
        %v1950 = vld [vmem:[%s688] sm:$0xf]
        %v1951 = vld [vmem:[%s688 + $0x4] sm:$0xf]
        %v1952 = vld [vmem:[%s688 + $0x8] sm:$0xf]
        %v1953 = vld [vmem:[%s688 + $0xc] sm:$0xf]
        %v1954 = vld [vmem:[%s688 + $0x10] sm:$0xf]
        %v1955 = vld [vmem:[%s688 + $0x14] sm:$0xf]
        %v1956 = vld [vmem:[%s688 + $0x18] sm:$0xf]
        %v1957 = vld [vmem:[%s688 + $0x1c] sm:$0xf]
        %v1958 = vld [vmem:[%s688 + $0x20] sm:$0xf]
        %v1959 = vld [vmem:[%s688 + $0x24] sm:$0xf]
        %v1960 = vld [vmem:[%s688 + $0x28] sm:$0xf]
        %v1961 = vld [vmem:[%s688 + $0x2c] sm:$0xf]
        %v1962 = vld [vmem:[%s688 + $0x30] sm:$0xf]
        %v1963 = vld [vmem:[%s688 + $0x34] sm:$0xf]
        %v1964 = vld [vmem:[%s688 + $0x38] sm:$0xf]
        %v1965 = vld [vmem:[%s688 + $0x3c] sm:$0xf]
        %v1966 = vld [vmem:[%s691] sm:$0x1]
        %v1968 = vlaneseq
        %v1969 = vshrl.u32 %v1968, 7
        %v1970 = vsub.s32 0, %v1969
        %v1971 = vrot.slane %v1966, %v1970
        %v1989 = vunpack.c.l.b16 %v1950
        %v1990 = vunpack.c.l.b16 %v1951
        %v1991 = vunpack.c.l.b16 %v1952
        %v1992 = vunpack.c.l.b16 %v1953
        %v1993 = vunpack.c.l.b16 %v1954
        %v1994 = vunpack.c.l.b16 %v1955
        %v1995 = vunpack.c.l.b16 %v1956
        %v1996 = vunpack.c.l.b16 %v1957
        %v1997 = vunpack.c.l.b16 %v1958
        %v1998 = vunpack.c.l.b16 %v1959
        %v1999 = vunpack.c.l.b16 %v1960
        %v2000 = vunpack.c.l.b16 %v1961
        %v2001 = vunpack.c.l.b16 %v1962
        %v2002 = vunpack.c.l.b16 %v1963
        %v2003 = vunpack.c.l.b16 %v1964
        %v2004 = vunpack.c.l.b16 %v1965
        %v2005 = vpack.c.b16 %v1990, %v1989
        %v2006 = vpack.c.b16 %v1992, %v1991
        %v2007 = vpack.c.b16 %v1994, %v1993
        %v2008 = vpack.c.b16 %v1996, %v1995
        %v2009 = vpack.c.b16 %v1998, %v1997
        %v2010 = vpack.c.b16 %v2000, %v1999
        %v2011 = vpack.c.b16 %v2002, %v2001
        %v2012 = vpack.c.b16 %v2004, %v2003
        %2021 = vmatprep.subr.bf16.mxu0 0
        %2022 = vmatpush1.bf16.msra.mxu0 %v2005
        %2023 = vmatprep.subr.bf16.mxu0 0
        %2024 = vmatpush1.bf16.msra.mxu0 %v2006
        %2025 = vmatprep.subr.bf16.mxu0 0
        %2026 = vmatpush1.bf16.msra.mxu0 %v2007
        %2027 = vmatprep.subr.bf16.mxu0 0
        %2028 = vmatpush1.bf16.msra.mxu0 %v2008
        %2029 = vmatprep.subr.bf16.mxu0 0
        %2030 = vmatpush1.bf16.msra.mxu0 %v2009
        %2031 = vmatprep.subr.bf16.mxu0 0
        %2032 = vmatpush1.bf16.msra.mxu0 %v2010
        %2033 = vmatprep.subr.bf16.mxu0 0
        %2034 = vmatpush1.bf16.msra.mxu0 %v2011
        %2035 = vmatprep.subr.bf16.mxu0 0
        %2036 = vmatpush1.bf16.msra.mxu0 %v2012
        %2037 = vmatprep.subr.bf16.mxu0 0
        %2038 = vmatpush1.bf16.msra.mxu0 0
        %2039 = vmatprep.subr.bf16.mxu0 0
        %2040 = vmatpush1.bf16.msra.mxu0 0
        %2041 = vmatprep.subr.bf16.mxu0 0
        %2042 = vmatpush1.bf16.msra.mxu0 0
        %2043 = vmatprep.subr.bf16.mxu0 0
        %2044 = vmatpush1.bf16.msra.mxu0 0
        %2045 = vmatprep.subr.bf16.mxu0 0
        %2046 = vmatpush1.bf16.msra.mxu0 0
        %2047 = vmatprep.subr.bf16.mxu0 0
        %2048 = vmatpush1.bf16.msra.mxu0 0
        %2049 = vmatprep.subr.bf16.mxu0 0
        %2050 = vmatpush1.bf16.msra.mxu0 0
        %2051 = vmatprep.subr.bf16.mxu0 0
        %2052 = vmatpush1.bf16.msra.mxu0 0
        %2053 = vmatprep.mubr.bf16.mxu0 0
        %2054 = vmatmul.mubr.bf16.gmra.mrb[0].mxu0 %v1949
        %v2055 = vpop.f32.mrb[0].mxu0
        %v2056 = vadd.f32 %v1971, %v2055
        %v2057 = vpop.f32.mrb[0].mxu0
        %v2058 = vpop.f32.mrb[0].mxu0
        %v2059 = vadd.f32 %v1971, %v2058
        %v2060 = vpop.f32.mrb[0].mxu0
        %2061 = vdwg.mxu0
        %v2062 = vadd.f32 %v1819, %v2056
        %v2063 = vadd.f32 %v1820, %v2059
        %2064 = vst.msk [vmem:[#allocation2] sm:$0xff] %vm711, %v2062
        %2065 = vst.msk [vmem:[#allocation2 + $0x8] sm:$0xff] %vm711, %v2063
        %p2066 = scmp.eq.s32.totalorder %s32, 1
        // Predicated region
        $region85: #{tpu_custom_call.1} parent=79 // pred_check
          %p2067 = pneg %p2066
        $region86: #{tpu_custom_call.1} parent=79 // pred_check_branch
          %2069 = sbr.rel (%p2067) target = $region88
        $region87: #{tpu_custom_call.1} parent=79 // pred_region
          %2070 = vst.msk [vmem:[#allocation4] sm:$0xff] %vm711, %v2062
          %2071 = vst.msk [vmem:[#allocation4 + $0x8] sm:$0xff] %vm711, %v2063
        $region88: #{tpu_custom_call.1} parent=79 // pred_fallthru
          _
        // Predicated region
        $region89: #{tpu_custom_call.1} parent=79 // pred_check
          %p2072 = pneg %p437
        $region90: #{tpu_custom_call.1} parent=79 // pred_check_branch
          %2074 = sbr.rel (%p2072) target = $region92
        $region91: #{tpu_custom_call.1} parent=79 // pred_region
          %s2075 = smul.u32 2, %s31
          %s2077 = ssub.s32 256, 256
          %2078 = vsyncadd [#allocation5], %s2077
          %s2079 = smul.addr %s2075, 128
          %s2080 = scalar_lea.hbm %s15, %s2079
          %s2081 = sshll.u32 [#allocation4], 4
          %s2082 = int_to_ptr.vmem [resolvable:$true] %s2081
          %2087 = dma.vmem_to_hbm [thread:$0]  %s2082, 256, %s2080, [#allocation5], 128, 128, 8
        $region92: #{tpu_custom_call.1} parent=79 // pred_fallthru
          _
        // Predicated region
        $region93: #{tpu_custom_call.1} parent=79 // pred_check
          %p2088 = pneg %p437
        $region94: #{tpu_custom_call.1} parent=79 // pred_check_branch
          %2090 = sbr.rel (%p2088) target = $region96
        $region95: #{tpu_custom_call.1} parent=79 // pred_region
          %2091 = dma.done [#allocation5], 256
        $region96: #{tpu_custom_call.1} parent=79 // pred_fallthru
          _
      $region80: #{tpu_custom_call.1} parent=5 // pred_fallthru
        _
      %p2092 = scmp.le.s32.totalorder 2, %s22
      // Predicated region
      $region97: #{tpu_custom_call.1} parent=5 // pred_check
        %p2093 = pneg %p2092
      $region98: #{tpu_custom_call.1} parent=5 // pred_check_branch
        %2095 = sbr.rel (%p2093) target = $region100
      $region99: #{tpu_custom_call.1} parent=5 // pred_region
        %s2096 = ssub.s32 %s22, 2
      $region100: #{tpu_custom_call.1} parent=5 // pred_fallthru
        _
    $region6: #{tpu_custom_call.1} parent=1 // loop_footer
      %s26 = sadd.s32 1, %s22
    $region7: #{tpu_custom_call.1} parent=1 // loop_footer_branch
      %21 = sbr.rel target = $region3
    $region8: #{tpu_custom_call.1} parent=1 // loop_exit
      _
    %2097 = vsyncpa [#allocation5], 1
    %s2098 = scalar_lea.sflag [#allocation5], 1
    %2099 = vsyncpa %s2098, 1

</llo_original>
